<compile_context>
chip_gen: v7x
topology: tpu7x:2x2x1
jax: 0.10.0
libtpu: 0.0.40
codegen_flags: <defaults>
</compile_context>

<pallas_src>
import functools

import jax
import jax.numpy as jnp
from jax.experimental import pallas as pl
from jax.experimental.pallas import tpu as pltpu


# ------------------------------ fused kernel ------------------------------- #

def _fused_forward_kernel(
    # inputs
    tok_ref, pools_ref, atom_ref, w1c_ref,
    llm_w1_ref, pa_w1a_ref, pa_w2_ref, fu_w1_ref, fu_head_w_ref,
    bias_ref, lmh_w_ref, lmh_b_ref,
    # outputs
    logits_ref, ctx_ref, mol_ref, patom_ref, heads_ref,
    # scratch
    h_sc,
    *, n_sel, d_model, d_mol, c_atom, c_hidden, f_hidden):
    """Entire MMada forward (minus embedding gathers) in VMEM.

    Grid axis = LM-head vocab tiles; all non-LM-head work runs once at step 0
    (pl.when) while subsequent lm_head_w tiles stream in behind it.  bf16 MXU
    matmuls with f32 accumulators; mean-pools in f32 for reference fidelity.
    """
    bf16 = jnp.bfloat16
    f32 = jnp.float32

    # bias_cat layout (all offsets are 128-multiples -> lane-aligned slices):
    # [ llm_b1(D) | pa_b1'(2C) | pa_b2(Dm) | fu_b1(F) | head_b'(rest) ]
    o1 = d_model
    o2 = o1 + c_hidden
    o3 = o2 + d_mol
    o4 = o3 + f_hidden

    @pl.when(pl.program_id(0) == 0)
    def _():
        # ---- synthetic LLM backbone hidden states -------------------------
        h = jnp.dot(tok_ref[...].astype(bf16), llm_w1_ref[...],
                    preferred_element_type=f32) + bias_ref[:, 0:o1]
        h = jnp.maximum(h, 0.0)                                   # (B*S, D) f32
        h_sc[...] = h.astype(bf16)        # persists across grid steps (LM head)

        # ---- masked mean-pool over SELFIES tokens (f32, lane-dense matmul) -
        sel_pool = pools_ref[:, 0:n_sel]                          # (Bp, B*S)
        inv_sel = pl.reciprocal(
            jnp.sum(sel_pool, axis=-1, keepdims=True) + 1e-5, approx=True)
        ctx = jnp.dot(sel_pool, h, preferred_element_type=f32) * inv_sel
        ctx_ref[...] = ctx.astype(ctx_ref.dtype)                  # (Bp, D)

        # ---- Molecular3DEncoder (coord projection folded into pa_w1) -------
        pos = atom_ref[:, 0:d_mol]                                # (B*A, Dm)
        aemb = atom_ref[:, d_mol:d_mol + c_atom]                  # (B*A, Ca)
        h1 = jnp.dot(aemb.astype(bf16), pa_w1a_ref[...],
                     preferred_element_type=f32) + bias_ref[:, o1:o2]
        for k in range(3):   # K=3 coord contribution: f32 VPU broadcast FMAs
            ck = atom_ref[:, d_mol + c_atom + k: d_mol + c_atom + k + 1]
            h1 = h1 + ck * w1c_ref[k:k + 1, :]
        h1 = jnp.maximum(h1, 0.0)                                 # (B*A, 2C)
        patom = (jnp.dot(h1.astype(bf16), pa_w2_ref[...],
                         preferred_element_type=f32)
                 + bias_ref[:, o2:o3] + pos)                      # (B*A, Dm)
        patom_ref[...] = patom.astype(patom_ref.dtype)

        # masked mean-pool over atoms (same lane-dense trick, f32)
        atom_pool = pools_ref[:, n_sel:]                          # (Bp, B*A)
        inv_atom = pl.reciprocal(
            jnp.sum(atom_pool, axis=-1, keepdims=True) + 1e-5, approx=True)
        mol = jnp.dot(atom_pool, patom, preferred_element_type=f32) * inv_atom
        mol_ref[...] = mol.astype(mol_ref.dtype)                  # (Bp, Dm)

        # ---- fusion MLP + (fu_w2 folded into) merged prediction heads ------
        f1 = jnp.dot(ctx.astype(bf16), fu_w1_ref[0:d_model, :],
                     preferred_element_type=f32)
        f1 = f1 + jnp.dot(mol.astype(bf16), fu_w1_ref[d_model:, :],
                          preferred_element_type=f32)
        f1 = jnp.maximum(f1 + bias_ref[:, o3:o4], 0.0)            # (Bp, F)
        heads = jnp.dot(f1.astype(bf16), fu_head_w_ref[...],
                        preferred_element_type=f32) + bias_ref[:, o4:]
        heads_ref[...] = heads.astype(heads_ref.dtype)            # (Bp, Hm)

    # every grid step: one lane-dense vocab tile of the LM head (bf16 out)
    logits_ref[...] = (jnp.dot(h_sc[...], lmh_w_ref[...],
                               preferred_element_type=f32)
                       + lmh_b_ref[...]).astype(logits_ref.dtype)


def _full_spec(x):
    """Full-array block, fetched once (block index constant over the grid)."""
    nd = x.ndim
    return pl.BlockSpec(x.shape, lambda j, _n=nd: (0,) * _n)


# --------------------------- model configuration --------------------------- #

class Cfg:
    d_model = 128                       # LLM hidden size (synthetic backbone)
    vocab_size = 256                    # synthetic SELFIES vocab
    mol_atom_embedding_dim = 64
    mol_coord_embedding_dim = 64
    mol_3d_encoder_output_dim = 128
    num_atom_types = 120
    max_atoms = 16
    output_atom_coords_dim = 3
    output_atom_type_dim = 120
    fusion_hidden_dim = 256
    final_condition_dim = 128


def init_params(key, cfg):
    """Synthetic init: matmul weights bf16 (MXU-native), biases/tables f32."""
    ks = iter(jax.random.split(key, 32))

    def w(shape, dtype=jnp.bfloat16):
        v = 0.02 * jax.random.normal(next(ks), shape, dtype=jnp.float32)
        return v.astype(dtype)

    combined = cfg.mol_atom_embedding_dim + cfg.mol_coord_embedding_dim
    fusion_in = cfg.d_model + cfg.mol_3d_encoder_output_dim
    p = {
        # synthetic LLM backbone (stand-in for LLaDAModelLM)
        "tok_emb": w((cfg.vocab_size, cfg.d_model), jnp.float32),
        "llm_w1": w((cfg.d_model, cfg.d_model)),
        "llm_b1": jnp.zeros((cfg.d_model,), jnp.float32),
        "lm_head_w": w((cfg.d_model, cfg.vocab_size)),
        "lm_head_b": jnp.zeros((cfg.vocab_size,), jnp.float32),
        # Molecular3DEncoder
        "atom_emb": w((cfg.num_atom_types, cfg.mol_atom_embedding_dim),
                      jnp.float32),
        "coord_w": w((cfg.output_atom_coords_dim, cfg.mol_coord_embedding_dim),
                     jnp.float32),
        "coord_b": jnp.zeros((cfg.mol_coord_embedding_dim,), jnp.float32),
        "pa_w1": w((combined, combined * 2)),
        "pa_b1": jnp.zeros((combined * 2,), jnp.float32),
        "pa_w2": w((combined * 2, cfg.mol_3d_encoder_output_dim)),
        "pa_b2": jnp.zeros((cfg.mol_3d_encoder_output_dim,), jnp.float32),
        # fusion MLP
        "fu_w1": w((fusion_in, cfg.fusion_hidden_dim)),
        "fu_b1": jnp.zeros((cfg.fusion_hidden_dim,), jnp.float32),
        "fu_w2": w((cfg.fusion_hidden_dim, cfg.final_condition_dim)),
        "fu_b2": jnp.zeros((cfg.final_condition_dim,), jnp.float32),
        # prediction heads (fu_w2 and these get folded together in the wrapper)
        "coord_head_w": w((cfg.final_condition_dim, cfg.output_atom_coords_dim)),
        "coord_head_b": jnp.zeros((cfg.output_atom_coords_dim,), jnp.float32),
        "atype_head_w": w((cfg.final_condition_dim, cfg.output_atom_type_dim)),
        "atype_head_b": jnp.zeros((cfg.output_atom_type_dim,), jnp.float32),
    }
    return p


def sinusoidal_pos_emb(num_pos, dim):
    """Standard sin/cos positional table: (num_pos, dim). Assumes even dim."""
    half = dim // 2
    pos = jnp.arange(num_pos, dtype=jnp.float32)[:, None]
    freqs = jnp.exp(
        -jnp.log(10000.0) * jnp.arange(half, dtype=jnp.float32) / half)
    args = pos * freqs[None, :]
    return jnp.concatenate([jnp.sin(args), jnp.cos(args)], axis=-1)


# ------------------------------ forward pass ------------------------------- #

def mmada_forward(params, cfg, selfies_input_ids, selfies_attention_mask,
                  atom_vec, coordinates, atoms_mask):
    f32 = jnp.float32
    bf16 = jnp.bfloat16
    B, S = selfies_input_ids.shape
    _, A = atom_vec.shape
    D = cfg.d_model
    Dm = cfg.mol_3d_encoder_output_dim
    Ca = cfg.mol_atom_embedding_dim
    V = cfg.vocab_size
    C2 = (cfg.mol_atom_embedding_dim + cfg.mol_coord_embedding_dim) * 2
    F = cfg.fusion_hidden_dim
    Bp = ((B + 7) // 8) * 8                 # pad pooled rows to sublane multiple

    # ---- embedding gathers + dense per-atom operand (JAX glue) ----
    tok = jnp.take(params["tok_emb"], selfies_input_ids,
                   axis=0).reshape(B * S, D)                              # (B*S,D)
    aemb = jnp.take(params["atom_emb"], atom_vec,
                    axis=0).reshape(B * A, Ca)                            # (B*A,Ca)
    coords = coordinates.astype(f32).reshape(B * A,
                                             cfg.output_atom_coords_dim)
    pos = jnp.tile(sinusoidal_pos_emb(A, Dm), (B, 1))                     # (B*A,Dm)
    atom_in = jnp.concatenate([pos, aemb, coords], axis=-1)               # 1 operand

    # block-diagonal pooling matrices, concatenated into one operand
    eye = jnp.eye(Bp, B, dtype=f32)
    sel_pool = (eye[:, :, None] *
                selfies_attention_mask.astype(f32)[None]).reshape(Bp, B * S)
    atom_pool = (eye[:, :, None] *
                 atoms_mask.astype(f32)[None]).reshape(Bp, B * A)
    pools = jnp.concatenate([sel_pool, atom_pool], axis=-1)               # (Bp, B*(S+A))

    # ---- algebraic weight folds (all linear; done once, in f32) ----
    # (a) coord_projection folded into the coord half of pa_w1
    pa_w1_f = params["pa_w1"].astype(f32)
    pa_w1_atom = pa_w1_f[:Ca].astype(bf16)                                # (Ca,2C)
    w1c = params["coord_w"].astype(f32) @ pa_w1_f[Ca:]                    # (3,2C) f32
    pa_b1_fold = params["pa_b1"] + params["coord_b"] @ pa_w1_f[Ca:]       # (2C,)
    # (b) fusion second layer folded into the merged [coords|atom_type] heads
    nc = cfg.output_atom_coords_dim
    nh = nc + cfg.output_atom_type_dim
    Hm = ((nh + 127) // 128) * 128
    head_w = jnp.concatenate([params["coord_head_w"].astype(f32),
                              params["atype_head_w"].astype(f32)], axis=1)
    head_b = jnp.concatenate([params["coord_head_b"], params["atype_head_b"]])
    fu_w2_f = params["fu_w2"].astype(f32)
    fu_head_w = jnp.pad(fu_w2_f @ head_w, ((0, 0), (0, Hm - nh))).astype(bf16)
    fu_head_b = jnp.pad(params["fu_b2"] @ head_w + head_b, (0, Hm - nh))

    # biases packed into one lane-aligned (1, 896) row
    bias_cat = jnp.concatenate([params["llm_b1"], pa_b1_fold, params["pa_b2"],
                                params["fu_b1"], fu_head_b]).reshape(1, -1)
    lm_head_b = params["lm_head_b"].reshape(1, V)

    tn = 128                              # vocab tile -> >= 2 pipelined grid steps
    assert V % tn == 0
    grid = (V // tn,)

    kernel = functools.partial(
        _fused_forward_kernel, n_sel=B * S, d_model=D, d_mol=Dm,
        c_atom=Ca, c_hidden=C2, f_hidden=F)

    operands = (tok, pools, atom_in, w1c,
                params["llm_w1"], pa_w1_atom, params["pa_w2"],
                params["fu_w1"], fu_head_w, bias_cat,
                params["lm_head_w"], lm_head_b)

    in_specs = [_full_spec(x) for x in operands[:-2]] + [
        pl.BlockSpec((D, tn), lambda j: (0, j)),     # lm_head_w: streamed tiles
        pl.BlockSpec((1, tn), lambda j: (0, j)),     # lm_head_b: streamed tiles
    ]

    logits_flat, ctx, mol, patom_flat, heads = pl.pallas_call(
        kernel,
        out_shape=(
            jax.ShapeDtypeStruct((B * S, V), bf16),     # selfies logits (bf16)
            jax.ShapeDtypeStruct((Bp, D), f32),         # selfies context embeds
            jax.ShapeDtypeStruct((Bp, Dm), f32),        # molecular embeds
            jax.ShapeDtypeStruct((B * A, Dm), f32),     # per-atom features
            jax.ShapeDtypeStruct((Bp, Hm), f32),        # merged head outputs
        ),
        grid=grid,
        in_specs=in_specs,
        out_specs=(
            pl.BlockSpec((B * S, tn), lambda j: (0, j)),
            pl.BlockSpec((Bp, D), lambda j: (0, 0)),
            pl.BlockSpec((Bp, Dm), lambda j: (0, 0)),
            pl.BlockSpec((B * A, Dm), lambda j: (0, 0)),
            pl.BlockSpec((Bp, Hm), lambda j: (0, 0)),
        ),
        scratch_shapes=[pltpu.VMEM((B * S, D), bf16)],   # hidden states, reused
        compiler_params=pltpu.CompilerParams(
            dimension_semantics=("arbitrary",)),
    )(*operands)

    # ---- cheap wrapper-side reshapes / splits ----
    selfies_logits = logits_flat.reshape(B, S, V)        # bf16 (half writeback)
    per_atom_features = patom_flat.reshape(B, A, Dm)
    selfies_context_embeds = ctx[:B]
    mol_3d_embeds = mol[:B]
    predicted_coordinates = heads[:B, :nc]
    predicted_atom_type_logits = heads[:B, nc:nh]

    return (predicted_coordinates, predicted_atom_type_logits, selfies_logits,
            selfies_context_embeds, mol_3d_embeds, per_atom_features)


# ----------------------------------- main ----------------------------------- #

if __name__ == "__main__":
    cfg = Cfg()
    key = jax.random.PRNGKey(0)
    kp, k1, k2, k3, k4 = jax.random.split(key, 5)

    params = init_params(kp, cfg)

    B, S, A = 2, 8, cfg.max_atoms
    selfies_input_ids = jax.random.randint(k1, (B, S), 0, cfg.vocab_size,
                                           dtype=jnp.int32)
    selfies_attention_mask = jnp.ones((B, S), jnp.int32).at[1, 6:].set(0)
    atom_vec = jax.random.randint(k2, (B, A), 1, cfg.num_atom_types,
                                  dtype=jnp.int32)
    coordinates = jax.random.normal(k3, (B, A, cfg.output_atom_coords_dim),
                                    dtype=jnp.float32)
    atoms_mask = (jax.random.uniform(k4, (B, A)) > 0.2)

    fwd = jax.jit(functools.partial(mmada_forward, params, cfg))
    outs = jax.block_until_ready(fwd(selfies_input_ids, selfies_attention_mask,
                                     atom_vec, coordinates, atoms_mask))

    (pred_coords, pred_atype_logits, selfies_logits,
     selfies_ctx, mol_embeds, per_atom_feats) = outs
    assert pred_coords.shape == (B, cfg.output_atom_coords_dim)
    assert pred_atype_logits.shape == (B, cfg.output_atom_type_dim)
    assert selfies_logits.shape == (B, S, cfg.vocab_size)
    assert selfies_ctx.shape == (B, cfg.d_model)
    assert mol_embeds.shape == (B, cfg.mol_3d_encoder_output_dim)
    assert per_atom_feats.shape == (B, A, cfg.mol_3d_encoder_output_dim)

    print("KERNEL_OK")
</pallas_src>

<mosaic_0001>
module attributes {stable_mosaic.version = 11 : i64} {
  func.func @_fused_forward_kernel(%arg0: i32, %arg1: memref<16x128xf32, #tpu.memory_space<vmem>>, %arg2: memref<8x48xf32, #tpu.memory_space<vmem>>, %arg3: memref<32x195xf32, #tpu.memory_space<vmem>>, %arg4: memref<3x256xf32, #tpu.memory_space<vmem>>, %arg5: memref<128x128xbf16, #tpu.memory_space<vmem>>, %arg6: memref<64x256xbf16, #tpu.memory_space<vmem>>, %arg7: memref<256x128xbf16, #tpu.memory_space<vmem>>, %arg8: memref<256x256xbf16, #tpu.memory_space<vmem>>, %arg9: memref<256x128xbf16, #tpu.memory_space<vmem>>, %arg10: memref<1x896xf32, #tpu.memory_space<vmem>>, %arg11: memref<128x128xbf16, #tpu.memory_space<vmem>>, %arg12: memref<1x128xf32, #tpu.memory_space<vmem>>, %arg13: memref<16x128xbf16, #tpu.memory_space<vmem>>, %arg14: memref<8x128xf32, #tpu.memory_space<vmem>>, %arg15: memref<8x128xf32, #tpu.memory_space<vmem>>, %arg16: memref<32x128xf32, #tpu.memory_space<vmem>>, %arg17: memref<8x128xf32, #tpu.memory_space<vmem>>, %arg18: memref<16x128xbf16, #tpu.memory_space<vmem>>) attributes {dimension_semantics = [#tpu.dimension_semantics<arbitrary>], iteration_bounds = array<i64: 2>, scalar_prefetch = 0 : i64, scratch_operands = 1 : i64, tpu.core_type = #tpu.core_type<tc>, window_params = [{pipeline_mode = #tpu.pipeline_mode<synchronous>, transform_indices = @transform_0, window_bounds = array<i64: 16, 128>}, {pipeline_mode = #tpu.pipeline_mode<synchronous>, transform_indices = @transform_1, window_bounds = array<i64: 8, 48>}, {pipeline_mode = #tpu.pipeline_mode<synchronous>, transform_indices = @transform_2, window_bounds = array<i64: 32, 195>}, {pipeline_mode = #tpu.pipeline_mode<synchronous>, transform_indices = @transform_3, window_bounds = array<i64: 3, 256>}, {pipeline_mode = #tpu.pipeline_mode<synchronous>, transform_indices = @transform_4, window_bounds = array<i64: 128, 128>}, {pipeline_mode = #tpu.pipeline_mode<synchronous>, transform_indices = @transform_5, window_bounds = array<i64: 64, 256>}, {pipeline_mode = #tpu.pipeline_mode<synchronous>, transform_indices = @transform_6, window_bounds = array<i64: 256, 128>}, {pipeline_mode = #tpu.pipeline_mode<synchronous>, transform_indices = @transform_7, window_bounds = array<i64: 256, 256>}, {pipeline_mode = #tpu.pipeline_mode<synchronous>, transform_indices = @transform_8, window_bounds = array<i64: 256, 128>}, {pipeline_mode = #tpu.pipeline_mode<synchronous>, transform_indices = @transform_9, window_bounds = array<i64: 1, 896>}, {transform_indices = @transform_10, window_bounds = array<i64: 128, 128>}, {transform_indices = @transform_11, window_bounds = array<i64: 1, 128>}, {transform_indices = @transform_12, window_bounds = array<i64: 16, 128>}, {pipeline_mode = #tpu.pipeline_mode<synchronous>, transform_indices = @transform_13, window_bounds = array<i64: 8, 128>}, {pipeline_mode = #tpu.pipeline_mode<synchronous>, transform_indices = @transform_14, window_bounds = array<i64: 8, 128>}, {pipeline_mode = #tpu.pipeline_mode<synchronous>, transform_indices = @transform_15, window_bounds = array<i64: 32, 128>}, {pipeline_mode = #tpu.pipeline_mode<synchronous>, transform_indices = @transform_16, window_bounds = array<i64: 8, 128>}]} {
    %c0_i32 = arith.constant 0 : i32
    %0 = arith.cmpi eq, %arg0, %c0_i32 : i32
    %1 = arith.extui %0 : i1 to i32
    %c0_i32_0 = arith.constant 0 : i32
    %2 = arith.cmpi ne, %1, %c0_i32_0 : i32
    scf.if %2 {
      %c0_8 = arith.constant 0 : index
      %c0_9 = arith.constant 0 : index
      %11 = vector.load %arg1[%c0_8, %c0_9] : memref<16x128xf32, #tpu.memory_space<vmem>>, vector<16x128xf32>
      %12 = arith.truncf %11 : vector<16x128xf32> to vector<16x128xbf16>
      %c0_10 = arith.constant 0 : index
      %c0_11 = arith.constant 0 : index
      %13 = vector.load %arg5[%c0_10, %c0_11] : memref<128x128xbf16, #tpu.memory_space<vmem>>, vector<128x128xbf16>
      %cst_12 = arith.constant dense<0.000000e+00> : vector<16x128xf32>
      %14 = tpu.matmul %12, %13, %cst_12 {dimension_numbers = #tpu.dot_dimension_numbers<[1], [0], [0], [1], [0, 0, 1, 1], [], []>} : vector<16x128xbf16>, vector<128x128xbf16>, vector<16x128xf32> -> vector<16x128xf32>
      %c0_13 = arith.constant 0 : index
      %c0_14 = arith.constant 0 : index
      %15 = vector.load %arg10[%c0_13, %c0_14] : memref<1x896xf32, #tpu.memory_space<vmem>>, vector<1x128xf32>
      %16 = vector.broadcast %15 : vector<1x128xf32> to vector<16x128xf32>
      %17 = arith.addf %14, %16 : vector<16x128xf32>
      %cst_15 = arith.constant 0.000000e+00 : f32
      %18 = vector.broadcast %cst_15 : f32 to vector<16x128xf32>
      %19 = arith.maximumf %17, %18 : vector<16x128xf32>
      %20 = arith.truncf %19 : vector<16x128xf32> to vector<16x128xbf16>
      %c0_16 = arith.constant 0 : index
      %c0_17 = arith.constant 0 : index
      %21 = vector.load %arg18[%c0_16, %c0_17] : memref<16x128xbf16, #tpu.memory_space<vmem>>, vector<16x128xbf16>
      tpu.vector_store %arg18[%c0_16, %c0_17], %20 {strides = array<i32>} : memref<16x128xbf16, #tpu.memory_space<vmem>>, vector<16x128xbf16>,
      %c0_18 = arith.constant 0 : index
      %c0_19 = arith.constant 0 : index
      %22 = vector.load %arg2[%c0_18, %c0_19] : memref<8x48xf32, #tpu.memory_space<vmem>>, vector<8x16xf32>
      %cst_20 = arith.constant dense<0.000000e+00> : vector<8xf32>
      %23 = vector.multi_reduction <add>, %22, %cst_20 [1] : vector<8x16xf32> to vector<8xf32>
      %24 = vector.shape_cast %23 : vector<8xf32> to vector<8x1xf32>
      %cst_21 = arith.constant 9.99999974E-6 : f32
      %25 = vector.broadcast %cst_21 : f32 to vector<8x1xf32>
      %26 = arith.addf %24, %25 : vector<8x1xf32>
      %27 = tpu.reciprocal %26 {approx = true} : vector<8x1xf32> -> vector<8x1xf32>
      %cst_22 = arith.constant dense<0.000000e+00> : vector<8x128xf32>
      %28 = tpu.matmul %22, %19, %cst_22 {dimension_numbers = #tpu.dot_dimension_numbers<[1], [0], [0], [1], [0, 0, 1, 1], [], []>} : vector<8x16xf32>, vector<16x128xf32>, vector<8x128xf32> -> vector<8x128xf32>
      %29 = vector.broadcast %27 : vector<8x1xf32> to vector<8x128xf32>
      %30 = arith.mulf %28, %29 : vector<8x128xf32>
      %c0_23 = arith.constant 0 : index
      %c0_24 = arith.constant 0 : index
      %31 = vector.load %arg14[%c0_23, %c0_24] : memref<8x128xf32, #tpu.memory_space<vmem>>, vector<8x128xf32>
      tpu.vector_store %arg14[%c0_23, %c0_24], %30 {strides = array<i32>} : memref<8x128xf32, #tpu.memory_space<vmem>>, vector<8x128xf32>,
      %c0_25 = arith.constant 0 : index
      %c0_26 = arith.constant 0 : index
      %32 = vector.load %arg3[%c0_25, %c0_26] : memref<32x195xf32, #tpu.memory_space<vmem>>, vector<32x128xf32>
      %c0_27 = arith.constant 0 : index
      %c128 = arith.constant 128 : index
      %33 = vector.load %arg3[%c0_27, %c128] : memref<32x195xf32, #tpu.memory_space<vmem>>, vector<32x64xf32>
      %34 = arith.truncf %33 : vector<32x64xf32> to vector<32x64xbf16>
      %c0_28 = arith.constant 0 : index
      %c0_29 = arith.constant 0 : index
      %35 = vector.load %arg6[%c0_28, %c0_29] : memref<64x256xbf16, #tpu.memory_space<vmem>>, vector<64x256xbf16>
      %cst_30 = arith.constant dense<0.000000e+00> : vector<32x256xf32>
      %36 = tpu.matmul %34, %35, %cst_30 {dimension_numbers = #tpu.dot_dimension_numbers<[1], [0], [0], [1], [0, 0, 1, 1], [], []>} : vector<32x64xbf16>, vector<64x256xbf16>, vector<32x256xf32> -> vector<32x256xf32>
      %c0_31 = arith.constant 0 : index
      %c128_32 = arith.constant 128 : index
      %37 = vector.load %arg10[%c0_31, %c128_32] : memref<1x896xf32, #tpu.memory_space<vmem>>, vector<1x256xf32>
      %38 = vector.broadcast %37 : vector<1x256xf32> to vector<32x256xf32>
      %39 = arith.addf %36, %38 : vector<32x256xf32>
      %c0_33 = arith.constant 0 : index
      %c192 = arith.constant 192 : index
      %40 = vector.load %arg3[%c0_33, %c192] : memref<32x195xf32, #tpu.memory_space<vmem>>, vector<32x1xf32>
      %c0_34 = arith.constant 0 : index
      %c0_35 = arith.constant 0 : index
      %41 = vector.load %arg4[%c0_34, %c0_35] : memref<3x256xf32, #tpu.memory_space<vmem>>, vector<1x256xf32>
      %42 = vector.broadcast %40 : vector<32x1xf32> to vector<32x256xf32>
      %43 = vector.broadcast %41 : vector<1x256xf32> to vector<32x256xf32>
      %44 = arith.mulf %42, %43 : vector<32x256xf32>
      %45 = arith.addf %39, %44 : vector<32x256xf32>
      %c0_36 = arith.constant 0 : index
      %c193 = arith.constant 193 : index
      %46 = vector.load %arg3[%c0_36, %c193] : memref<32x195xf32, #tpu.memory_space<vmem>>, vector<32x1xf32>
      %c1 = arith.constant 1 : index
      %c0_37 = arith.constant 0 : index
      %47 = vector.load %arg4[%c1, %c0_37] : memref<3x256xf32, #tpu.memory_space<vmem>>, vector<1x256xf32>
      %48 = vector.broadcast %46 : vector<32x1xf32> to vector<32x256xf32>
      %49 = vector.broadcast %47 : vector<1x256xf32> to vector<32x256xf32>
      %50 = arith.mulf %48, %49 : vector<32x256xf32>
      %51 = arith.addf %45, %50 : vector<32x256xf32>
      %c0_38 = arith.constant 0 : index
      %c194 = arith.constant 194 : index
      %52 = vector.load %arg3[%c0_38, %c194] : memref<32x195xf32, #tpu.memory_space<vmem>>, vector<32x1xf32>
      %c2 = arith.constant 2 : index
      %c0_39 = arith.constant 0 : index
      %53 = vector.load %arg4[%c2, %c0_39] : memref<3x256xf32, #tpu.memory_space<vmem>>, vector<1x256xf32>
      %54 = vector.broadcast %52 : vector<32x1xf32> to vector<32x256xf32>
      %55 = vector.broadcast %53 : vector<1x256xf32> to vector<32x256xf32>
      %56 = arith.mulf %54, %55 : vector<32x256xf32>
      %57 = arith.addf %51, %56 : vector<32x256xf32>
      %cst_40 = arith.constant 0.000000e+00 : f32
      %58 = vector.broadcast %cst_40 : f32 to vector<32x256xf32>
      %59 = arith.maximumf %57, %58 : vector<32x256xf32>
      %60 = arith.truncf %59 : vector<32x256xf32> to vector<32x256xbf16>
      %c0_41 = arith.constant 0 : index
      %c0_42 = arith.constant 0 : index
      %61 = vector.load %arg7[%c0_41, %c0_42] : memref<256x128xbf16, #tpu.memory_space<vmem>>, vector<256x128xbf16>
      %cst_43 = arith.constant dense<0.000000e+00> : vector<32x128xf32>
      %62 = tpu.matmul %60, %61, %cst_43 {dimension_numbers = #tpu.dot_dimension_numbers<[1], [0], [0], [1], [0, 0, 1, 1], [], []>} : vector<32x256xbf16>, vector<256x128xbf16>, vector<32x128xf32> -> vector<32x128xf32>
      %c0_44 = arith.constant 0 : index
      %c384 = arith.constant 384 : index
      %63 = vector.load %arg10[%c0_44, %c384] : memref<1x896xf32, #tpu.memory_space<vmem>>, vector<1x128xf32>
      %64 = vector.broadcast %63 : vector<1x128xf32> to vector<32x128xf32>
      %65 = arith.addf %62, %64 : vector<32x128xf32>
      %66 = arith.addf %65, %32 : vector<32x128xf32>
      %c0_45 = arith.constant 0 : index
      %c0_46 = arith.constant 0 : index
      %67 = vector.load %arg16[%c0_45, %c0_46] : memref<32x128xf32, #tpu.memory_space<vmem>>, vector<32x128xf32>
      tpu.vector_store %arg16[%c0_45, %c0_46], %66 {strides = array<i32>} : memref<32x128xf32, #tpu.memory_space<vmem>>, vector<32x128xf32>,
      %c0_47 = arith.constant 0 : index
      %c16 = arith.constant 16 : index
      %68 = vector.load %arg2[%c0_47, %c16] : memref<8x48xf32, #tpu.memory_space<vmem>>, vector<8x32xf32>
      %cst_48 = arith.constant dense<0.000000e+00> : vector<8xf32>
      %69 = vector.multi_reduction <add>, %68, %cst_48 [1] : vector<8x32xf32> to vector<8xf32>
      %70 = vector.shape_cast %69 : vector<8xf32> to vector<8x1xf32>
      %cst_49 = arith.constant 9.99999974E-6 : f32
      %71 = vector.broadcast %cst_49 : f32 to vector<8x1xf32>
      %72 = arith.addf %70, %71 : vector<8x1xf32>
      %73 = tpu.reciprocal %72 {approx = true} : vector<8x1xf32> -> vector<8x1xf32>
      %cst_50 = arith.constant dense<0.000000e+00> : vector<8x128xf32>
      %74 = tpu.matmul %68, %66, %cst_50 {dimension_numbers = #tpu.dot_dimension_numbers<[1], [0], [0], [1], [0, 0, 1, 1], [], []>} : vector<8x32xf32>, vector<32x128xf32>, vector<8x128xf32> -> vector<8x128xf32>
      %75 = vector.broadcast %73 : vector<8x1xf32> to vector<8x128xf32>
      %76 = arith.mulf %74, %75 : vector<8x128xf32>
      %c0_51 = arith.constant 0 : index
      %c0_52 = arith.constant 0 : index
      %77 = vector.load %arg15[%c0_51, %c0_52] : memref<8x128xf32, #tpu.memory_space<vmem>>, vector<8x128xf32>
      tpu.vector_store %arg15[%c0_51, %c0_52], %76 {strides = array<i32>} : memref<8x128xf32, #tpu.memory_space<vmem>>, vector<8x128xf32>,
      %78 = arith.truncf %30 : vector<8x128xf32> to vector<8x128xbf16>
      %c0_53 = arith.constant 0 : index
      %c0_54 = arith.constant 0 : index
      %79 = vector.load %arg8[%c0_53, %c0_54] : memref<256x256xbf16, #tpu.memory_space<vmem>>, vector<128x256xbf16>
      %cst_55 = arith.constant dense<0.000000e+00> : vector<8x256xf32>
      %80 = tpu.matmul %78, %79, %cst_55 {dimension_numbers = #tpu.dot_dimension_numbers<[1], [0], [0], [1], [0, 0, 1, 1], [], []>} : vector<8x128xbf16>, vector<128x256xbf16>, vector<8x256xf32> -> vector<8x256xf32>
      %81 = arith.truncf %76 : vector<8x128xf32> to vector<8x128xbf16>
      %c128_56 = arith.constant 128 : index
      %c0_57 = arith.constant 0 : index
      %82 = vector.load %arg8[%c128_56, %c0_57] : memref<256x256xbf16, #tpu.memory_space<vmem>>, vector<128x256xbf16>
      %cst_58 = arith.constant dense<0.000000e+00> : vector<8x256xf32>
      %83 = tpu.matmul %81, %82, %cst_58 {dimension_numbers = #tpu.dot_dimension_numbers<[1], [0], [0], [1], [0, 0, 1, 1], [], []>} : vector<8x128xbf16>, vector<128x256xbf16>, vector<8x256xf32> -> vector<8x256xf32>
      %84 = arith.addf %80, %83 : vector<8x256xf32>
      %c0_59 = arith.constant 0 : index
      %c512 = arith.constant 512 : index
      %85 = vector.load %arg10[%c0_59, %c512] : memref<1x896xf32, #tpu.memory_space<vmem>>, vector<1x256xf32>
      %86 = vector.broadcast %85 : vector<1x256xf32> to vector<8x256xf32>
      %87 = arith.addf %84, %86 : vector<8x256xf32>
      %cst_60 = arith.constant 0.000000e+00 : f32
      %88 = vector.broadcast %cst_60 : f32 to vector<8x256xf32>
      %89 = arith.maximumf %87, %88 : vector<8x256xf32>
      %90 = arith.truncf %89 : vector<8x256xf32> to vector<8x256xbf16>
      %c0_61 = arith.constant 0 : index
      %c0_62 = arith.constant 0 : index
      %91 = vector.load %arg9[%c0_61, %c0_62] : memref<256x128xbf16, #tpu.memory_space<vmem>>, vector<256x128xbf16>
      %cst_63 = arith.constant dense<0.000000e+00> : vector<8x128xf32>
      %92 = tpu.matmul %90, %91, %cst_63 {dimension_numbers = #tpu.dot_dimension_numbers<[1], [0], [0], [1], [0, 0, 1, 1], [], []>} : vector<8x256xbf16>, vector<256x128xbf16>, vector<8x128xf32> -> vector<8x128xf32>
      %c0_64 = arith.constant 0 : index
      %c768 = arith.constant 768 : index
      %93 = vector.load %arg10[%c0_64, %c768] : memref<1x896xf32, #tpu.memory_space<vmem>>, vector<1x128xf32>
      %94 = vector.broadcast %93 : vector<1x128xf32> to vector<8x128xf32>
      %95 = arith.addf %92, %94 : vector<8x128xf32>
      %c0_65 = arith.constant 0 : index
      %c0_66 = arith.constant 0 : index
      %96 = vector.load %arg17[%c0_65, %c0_66] : memref<8x128xf32, #tpu.memory_space<vmem>>, vector<8x128xf32>
      tpu.vector_store %arg17[%c0_65, %c0_66], %95 {strides = array<i32>} : memref<8x128xf32, #tpu.memory_space<vmem>>, vector<8x128xf32>,
    } else {
    }
    %c0 = arith.constant 0 : index
    %c0_1 = arith.constant 0 : index
    %3 = vector.load %arg18[%c0, %c0_1] : memref<16x128xbf16, #tpu.memory_space<vmem>>, vector<16x128xbf16>
    %c0_2 = arith.constant 0 : index
    %c0_3 = arith.constant 0 : index
    %4 = vector.load %arg11[%c0_2, %c0_3] : memref<128x128xbf16, #tpu.memory_space<vmem>>, vector<128x128xbf16>
    %cst = arith.constant dense<0.000000e+00> : vector<16x128xf32>
    %5 = tpu.matmul %3, %4, %cst {dimension_numbers = #tpu.dot_dimension_numbers<[1], [0], [0], [1], [0, 0, 1, 1], [], []>} : vector<16x128xbf16>, vector<128x128xbf16>, vector<16x128xf32> -> vector<16x128xf32>
    %c0_4 = arith.constant 0 : index
    %c0_5 = arith.constant 0 : index
    %6 = vector.load %arg12[%c0_4, %c0_5] : memref<1x128xf32, #tpu.memory_space<vmem>>, vector<1x128xf32>
    %7 = vector.broadcast %6 : vector<1x128xf32> to vector<16x128xf32>
    %8 = arith.addf %5, %7 : vector<16x128xf32>
    %9 = arith.truncf %8 : vector<16x128xf32> to vector<16x128xbf16>
    %c0_6 = arith.constant 0 : index
    %c0_7 = arith.constant 0 : index
    %10 = vector.load %arg13[%c0_6, %c0_7] : memref<16x128xbf16, #tpu.memory_space<vmem>>, vector<16x128xbf16>
    tpu.vector_store %arg13[%c0_6, %c0_7], %9 {strides = array<i32>} : memref<16x128xbf16, #tpu.memory_space<vmem>>, vector<16x128xbf16>,
    return
  }
  func.func @transform_0(%arg0: i32) -> (i32, i32) {
    %c0_i32 = arith.constant 0 : i32
    %c0_i32_0 = arith.constant 0 : i32
    %c0_i32_1 = arith.constant 0 : i32
    return %c0_i32, %c0_i32_0 : i32, i32
  }
  func.func @transform_1(%arg0: i32) -> (i32, i32) {
    %c0_i32 = arith.constant 0 : i32
    %c0_i32_0 = arith.constant 0 : i32
    %c0_i32_1 = arith.constant 0 : i32
    return %c0_i32, %c0_i32_0 : i32, i32
  }
  func.func @transform_2(%arg0: i32) -> (i32, i32) {
    %c0_i32 = arith.constant 0 : i32
    %c0_i32_0 = arith.constant 0 : i32
    %c0_i32_1 = arith.constant 0 : i32
    return %c0_i32, %c0_i32_0 : i32, i32
  }
  func.func @transform_3(%arg0: i32) -> (i32, i32) {
    %c0_i32 = arith.constant 0 : i32
    %c0_i32_0 = arith.constant 0 : i32
    %c0_i32_1 = arith.constant 0 : i32
    return %c0_i32, %c0_i32_0 : i32, i32
  }
  func.func @transform_4(%arg0: i32) -> (i32, i32) {
    %c0_i32 = arith.constant 0 : i32
    %c0_i32_0 = arith.constant 0 : i32
    %c0_i32_1 = arith.constant 0 : i32
    return %c0_i32, %c0_i32_0 : i32, i32
  }
  func.func @transform_5(%arg0: i32) -> (i32, i32) {
    %c0_i32 = arith.constant 0 : i32
    %c0_i32_0 = arith.constant 0 : i32
    %c0_i32_1 = arith.constant 0 : i32
    return %c0_i32, %c0_i32_0 : i32, i32
  }
  func.func @transform_6(%arg0: i32) -> (i32, i32) {
    %c0_i32 = arith.constant 0 : i32
    %c0_i32_0 = arith.constant 0 : i32
    %c0_i32_1 = arith.constant 0 : i32
    return %c0_i32, %c0_i32_0 : i32, i32
  }
  func.func @transform_7(%arg0: i32) -> (i32, i32) {
    %c0_i32 = arith.constant 0 : i32
    %c0_i32_0 = arith.constant 0 : i32
    %c0_i32_1 = arith.constant 0 : i32
    return %c0_i32, %c0_i32_0 : i32, i32
  }
  func.func @transform_8(%arg0: i32) -> (i32, i32) {
    %c0_i32 = arith.constant 0 : i32
    %c0_i32_0 = arith.constant 0 : i32
    %c0_i32_1 = arith.constant 0 : i32
    return %c0_i32, %c0_i32_0 : i32, i32
  }
  func.func @transform_9(%arg0: i32) -> (i32, i32) {
    %c0_i32 = arith.constant 0 : i32
    %c0_i32_0 = arith.constant 0 : i32
    %c0_i32_1 = arith.constant 0 : i32
    return %c0_i32, %c0_i32_0 : i32, i32
  }
  func.func @transform_10(%arg0: i32) -> (i32, i32) {
    %c0_i32 = arith.constant 0 : i32
    %c0_i32_0 = arith.constant 0 : i32
    return %c0_i32, %arg0 : i32, i32
  }
  func.func @transform_11(%arg0: i32) -> (i32, i32) {
    %c0_i32 = arith.constant 0 : i32
    %c0_i32_0 = arith.constant 0 : i32
    return %c0_i32, %arg0 : i32, i32
  }
  func.func @transform_12(%arg0: i32) -> (i32, i32) {
    %c0_i32 = arith.constant 0 : i32
    %c0_i32_0 = arith.constant 0 : i32
    return %c0_i32, %arg0 : i32, i32
  }
  func.func @transform_13(%arg0: i32) -> (i32, i32) {
    %c0_i32 = arith.constant 0 : i32
    %c0_i32_0 = arith.constant 0 : i32
    %c0_i32_1 = arith.constant 0 : i32
    return %c0_i32, %c0_i32_0 : i32, i32
  }
  func.func @transform_14(%arg0: i32) -> (i32, i32) {
    %c0_i32 = arith.constant 0 : i32
    %c0_i32_0 = arith.constant 0 : i32
    %c0_i32_1 = arith.constant 0 : i32
    return %c0_i32, %c0_i32_0 : i32, i32
  }
  func.func @transform_15(%arg0: i32) -> (i32, i32) {
    %c0_i32 = arith.constant 0 : i32
    %c0_i32_0 = arith.constant 0 : i32
    %c0_i32_1 = arith.constant 0 : i32
    return %c0_i32, %c0_i32_0 : i32, i32
  }
  func.func @transform_16(%arg0: i32) -> (i32, i32) {
    %c0_i32 = arith.constant 0 : i32
    %c0_i32_0 = arith.constant 0 : i32
    %c0_i32_1 = arith.constant 0 : i32
    return %c0_i32, %c0_i32_0 : i32, i32
  }
}

</mosaic_0001>

<llo_original>
// kernel: mmada_forward.1
$region0: #{mmada_forward.1}
  #allocation0 [shape = 'u32[]', space=smem, size = 0x4, offset = 0x4, fixed_abs, tag = 'smem constant byte address 0x4 - core index']
  #allocation1 [shape = 'u32[144,128]{1,0:T(1,128)}', space=vmem, size = 0x12000, scoped, tag = 'internal scratch']
  #allocation2 [shape = 'bf16[16,128]{1,0:T(16,128)(2,1)}', space=vmem, size = 0x1000, scoped, tag = 'scratch operand']
  %s0 = inlined_call_operand.vmem [shape: f32[16,128], index: 0, kind: input, shape index: {}]
  %s1 = inlined_call_operand.vmem [shape: f32[8,48], index: 1, kind: input, shape index: {}]
  %s2 = inlined_call_operand.vmem [shape: f32[32,195], index: 2, kind: input, shape index: {}]
  %s3 = inlined_call_operand.vmem [shape: f32[3,256], index: 3, kind: input, shape index: {}]
  %s4 = inlined_call_operand.vmem [shape: bf16[128,128], index: 4, kind: input, shape index: {}]
  %s5 = inlined_call_operand.vmem [shape: bf16[64,256], index: 5, kind: input, shape index: {}]
  %s6 = inlined_call_operand.vmem [shape: bf16[256,128], index: 6, kind: input, shape index: {}]
  %s7 = inlined_call_operand.vmem [shape: bf16[256,256], index: 7, kind: input, shape index: {}]
  %s8 = inlined_call_operand.vmem [shape: bf16[256,128], index: 8, kind: input, shape index: {}]
  %s9 = inlined_call_operand.vmem [shape: f32[1,896], index: 9, kind: input, shape index: {}]
  %s10 = inlined_call_operand.vmem [shape: bf16[128,256], index: 10, kind: input, shape index: {}]
  %s11 = inlined_call_operand.vmem [shape: f32[1,256], index: 11, kind: input, shape index: {}]
  %s12 = inlined_call_operand.hbm [shape: bf16[16,256], index: 12, kind: output, shape index: {0}]
  %s13 = inlined_call_operand.vmem [shape: f32[8,128], index: 13, kind: output, shape index: {1}]
  %s14 = inlined_call_operand.vmem [shape: f32[8,128], index: 14, kind: output, shape index: {2}]
  %s15 = inlined_call_operand.hbm [shape: f32[32,128], index: 15, kind: output, shape index: {3}]
  %s16 = inlined_call_operand.vmem [shape: f32[8,128], index: 16, kind: output, shape index: {4}]
  %17 = xla_tuple %s12, %s13, %s14, %s15, %s16
  %s18 = sld [smem:[#allocation0]]
  $region158: #{mmada_forward.1} parent=0
    _
  %s20 = ssub.s32 1, %s18
  %s21 = scalar_select 0, %s20, %s18
  $region1: #{mmada_forward.1} parent=0
    #allocation3 [shape = 'u8[65536]{0}', space=vmem, size = 0x10000, scoped, tag = 'input window, operand 10']
    #allocation4 [shape = 'u8[8192]{0}', space=vmem, size = 0x2000, scoped, tag = 'output window, operand 0']
    #allocation5 [shape = 's32[2]{0}', space=sflag, size = 0x8, scoped, tag = 'scoped memory for mmada_forward.1']
    #allocation6 [shape = 'u8[16384]{0}', space=vmem, size = 0x4000, scoped, tag = 'output window, operand 3, single buffered']
    #allocation7 [shape = 's32[1]{0}', space=sflag, size = 0x4, scoped, tag = 'scoped memory for mmada_forward.1']
    %22 = vsyncpa [#allocation5], 0
    %s23 = scalar_lea.sflag [#allocation5], 1
    %24 = vsyncpa %s23, 0
    %25 = vsyncpa [#allocation7], 0
    loop: start=0, step=1, limit=4
    $region2: #{mmada_forward.1} parent=1 // loop_pre_header
      _
    $region3: #{mmada_forward.1} parent=1 // loop_header
      %s27 = sphi 0, %s31
      %p28 = scmp.ge.s32.totalorder %s27, 4
      %s35 = sphi 0, %s35
      %s37 = sphi 0, %s35
      %s38 = sphi 0, %s37
      %s52 = sphi 0, %s38
      %s56 = sphi 0, %s56
      %s58 = sphi 0, %s56
      %s59 = sphi 0, %s58
      %s73 = sphi 0, %s59
      %s77 = sphi 0, %s77
      %s79 = sphi 0, %s77
      %s80 = sphi 0, %s79
      %s94 = sphi 0, %s80
      %s98 = sphi 0, %s98
      %s100 = sphi 0, %s98
      %s101 = sphi 0, %s100
      %s115 = sphi 0, %s101
      %s119 = sphi 0, %s119
      %s121 = sphi 0, %s119
      %s122 = sphi 0, %s121
      %s136 = sphi 0, %s122
      %s140 = sphi 0, %s140
      %s142 = sphi 0, %s140
      %s143 = sphi 0, %s142
      %s157 = sphi 0, %s143
      %s161 = sphi 0, %s161
      %s163 = sphi 0, %s161
      %s164 = sphi 0, %s163
      %s178 = sphi 0, %s164
      %s182 = sphi 0, %s182
      %s184 = sphi 0, %s182
      %s185 = sphi 0, %s184
      %s199 = sphi 0, %s185
      %s203 = sphi 0, %s203
      %s205 = sphi 0, %s203
      %s206 = sphi 0, %s205
      %s220 = sphi 0, %s206
      %s224 = sphi 0, %s224
      %s226 = sphi 0, %s224
      %s227 = sphi 0, %s226
      %s241 = sphi 0, %s227
      %s247 = sphi 0, %s249
      %s250 = sphi 0, %s247
      %s251 = sphi 0, %s250
      %s267 = sphi 0, %s251
      %s273 = sphi 0, %s275
      %s276 = sphi 0, %s273
      %s277 = sphi 0, %s276
      %s293 = sphi 0, %s277
      %s299 = sphi 0, %s301
      %s302 = sphi 0, %s299
      %s303 = sphi 0, %s302
      %s319 = sphi 0, %s303
      %s323 = sphi 0, %s323
      %s325 = sphi 0, %s323
      %s326 = sphi 0, %s325
      %s340 = sphi 0, %s326
      %s344 = sphi 0, %s344
      %s346 = sphi 0, %s344
      %s347 = sphi 0, %s346
      %s361 = sphi 0, %s347
      %s365 = sphi 0, %s365
      %s367 = sphi 0, %s365
      %s368 = sphi 0, %s367
      %s382 = sphi 0, %s368
      %s386 = sphi 0, %s386
      %s388 = sphi 0, %s386
      %s389 = sphi 0, %s388
      %s403 = sphi 0, %s389
    $region4: #{mmada_forward.1} parent=1 // loop_header_branch
      %30 = sbr.rel (%p28) target = $region8
    $region5: #{mmada_forward.1} parent=1 // loop_body
      %s32 = ssub.s32 %s27, 1
      %s33 = ssub.s32 %s27, 2
      %s34 = sadd.s32 %s27, 1
      %s36 = sadd.s32 %s35, 1
      %p39 = scmp.eq.s32.totalorder %s27, 1
      %p40 = scmp.ne.s32.totalorder %s35, %s37
      %p41 = scmp.eq.s32.totalorder %s27, 0
      %p42 = por %p40, %p41
      %p43 = scmp.ne.s32.totalorder %s35, %s37
      %p44 = scmp.eq.s32.totalorder %s32, 1
      %p45 = por %p43, %p44
      %p46 = scmp.ne.s32.totalorder %s37, %s38
      %p47 = scmp.eq.s32.totalorder %s32, 0
      %p48 = por %p46, %p47
      %p49 = scmp.ne.s32.totalorder %s37, %s38
      %p50 = scmp.eq.s32.totalorder %s33, 1
      %p51 = por %p49, %p50
      %p53 = scmp.ne.s32.totalorder %s38, %s52
      %p54 = scmp.eq.s32.totalorder %s33, 0
      %p55 = por %p53, %p54
      %s57 = sadd.s32 %s56, 1
      %p60 = scmp.eq.s32.totalorder %s27, 1
      %p61 = scmp.ne.s32.totalorder %s56, %s58
      %p62 = scmp.eq.s32.totalorder %s27, 0
      %p63 = por %p61, %p62
      %p64 = scmp.ne.s32.totalorder %s56, %s58
      %p65 = scmp.eq.s32.totalorder %s32, 1
      %p66 = por %p64, %p65
      %p67 = scmp.ne.s32.totalorder %s58, %s59
      %p68 = scmp.eq.s32.totalorder %s32, 0
      %p69 = por %p67, %p68
      %p70 = scmp.ne.s32.totalorder %s58, %s59
      %p71 = scmp.eq.s32.totalorder %s33, 1
      %p72 = por %p70, %p71
      %p74 = scmp.ne.s32.totalorder %s59, %s73
      %p75 = scmp.eq.s32.totalorder %s33, 0
      %p76 = por %p74, %p75
      %s78 = sadd.s32 %s77, 1
      %p81 = scmp.eq.s32.totalorder %s27, 1
      %p82 = scmp.ne.s32.totalorder %s77, %s79
      %p83 = scmp.eq.s32.totalorder %s27, 0
      %p84 = por %p82, %p83
      %p85 = scmp.ne.s32.totalorder %s77, %s79
      %p86 = scmp.eq.s32.totalorder %s32, 1
      %p87 = por %p85, %p86
      %p88 = scmp.ne.s32.totalorder %s79, %s80
      %p89 = scmp.eq.s32.totalorder %s32, 0
      %p90 = por %p88, %p89
      %p91 = scmp.ne.s32.totalorder %s79, %s80
      %p92 = scmp.eq.s32.totalorder %s33, 1
      %p93 = por %p91, %p92
      %p95 = scmp.ne.s32.totalorder %s80, %s94
      %p96 = scmp.eq.s32.totalorder %s33, 0
      %p97 = por %p95, %p96
      %s99 = sadd.s32 %s98, 1
      %p102 = scmp.eq.s32.totalorder %s27, 1
      %p103 = scmp.ne.s32.totalorder %s98, %s100
      %p104 = scmp.eq.s32.totalorder %s27, 0
      %p105 = por %p103, %p104
      %p106 = scmp.ne.s32.totalorder %s98, %s100
      %p107 = scmp.eq.s32.totalorder %s32, 1
      %p108 = por %p106, %p107
      %p109 = scmp.ne.s32.totalorder %s100, %s101
      %p110 = scmp.eq.s32.totalorder %s32, 0
      %p111 = por %p109, %p110
      %p112 = scmp.ne.s32.totalorder %s100, %s101
      %p113 = scmp.eq.s32.totalorder %s33, 1
      %p114 = por %p112, %p113
      %p116 = scmp.ne.s32.totalorder %s101, %s115
      %p117 = scmp.eq.s32.totalorder %s33, 0
      %p118 = por %p116, %p117
      %s120 = sadd.s32 %s119, 1
      %p123 = scmp.eq.s32.totalorder %s27, 1
      %p124 = scmp.ne.s32.totalorder %s119, %s121
      %p125 = scmp.eq.s32.totalorder %s27, 0
      %p126 = por %p124, %p125
      %p127 = scmp.ne.s32.totalorder %s119, %s121
      %p128 = scmp.eq.s32.totalorder %s32, 1
      %p129 = por %p127, %p128
      %p130 = scmp.ne.s32.totalorder %s121, %s122
      %p131 = scmp.eq.s32.totalorder %s32, 0
      %p132 = por %p130, %p131
      %p133 = scmp.ne.s32.totalorder %s121, %s122
      %p134 = scmp.eq.s32.totalorder %s33, 1
      %p135 = por %p133, %p134
      %p137 = scmp.ne.s32.totalorder %s122, %s136
      %p138 = scmp.eq.s32.totalorder %s33, 0
      %p139 = por %p137, %p138
      %s141 = sadd.s32 %s140, 1
      %p144 = scmp.eq.s32.totalorder %s27, 1
      %p145 = scmp.ne.s32.totalorder %s140, %s142
      %p146 = scmp.eq.s32.totalorder %s27, 0
      %p147 = por %p145, %p146
      %p148 = scmp.ne.s32.totalorder %s140, %s142
      %p149 = scmp.eq.s32.totalorder %s32, 1
      %p150 = por %p148, %p149
      %p151 = scmp.ne.s32.totalorder %s142, %s143
      %p152 = scmp.eq.s32.totalorder %s32, 0
      %p153 = por %p151, %p152
      %p154 = scmp.ne.s32.totalorder %s142, %s143
      %p155 = scmp.eq.s32.totalorder %s33, 1
      %p156 = por %p154, %p155
      %p158 = scmp.ne.s32.totalorder %s143, %s157
      %p159 = scmp.eq.s32.totalorder %s33, 0
      %p160 = por %p158, %p159
      %s162 = sadd.s32 %s161, 1
      %p165 = scmp.eq.s32.totalorder %s27, 1
      %p166 = scmp.ne.s32.totalorder %s161, %s163
      %p167 = scmp.eq.s32.totalorder %s27, 0
      %p168 = por %p166, %p167
      %p169 = scmp.ne.s32.totalorder %s161, %s163
      %p170 = scmp.eq.s32.totalorder %s32, 1
      %p171 = por %p169, %p170
      %p172 = scmp.ne.s32.totalorder %s163, %s164
      %p173 = scmp.eq.s32.totalorder %s32, 0
      %p174 = por %p172, %p173
      %p175 = scmp.ne.s32.totalorder %s163, %s164
      %p176 = scmp.eq.s32.totalorder %s33, 1
      %p177 = por %p175, %p176
      %p179 = scmp.ne.s32.totalorder %s164, %s178
      %p180 = scmp.eq.s32.totalorder %s33, 0
      %p181 = por %p179, %p180
      %s183 = sadd.s32 %s182, 1
      %p186 = scmp.eq.s32.totalorder %s27, 1
      %p187 = scmp.ne.s32.totalorder %s182, %s184
      %p188 = scmp.eq.s32.totalorder %s27, 0
      %p189 = por %p187, %p188
      %p190 = scmp.ne.s32.totalorder %s182, %s184
      %p191 = scmp.eq.s32.totalorder %s32, 1
      %p192 = por %p190, %p191
      %p193 = scmp.ne.s32.totalorder %s184, %s185
      %p194 = scmp.eq.s32.totalorder %s32, 0
      %p195 = por %p193, %p194
      %p196 = scmp.ne.s32.totalorder %s184, %s185
      %p197 = scmp.eq.s32.totalorder %s33, 1
      %p198 = por %p196, %p197
      %p200 = scmp.ne.s32.totalorder %s185, %s199
      %p201 = scmp.eq.s32.totalorder %s33, 0
      %p202 = por %p200, %p201
      %s204 = sadd.s32 %s203, 1
      %p207 = scmp.eq.s32.totalorder %s27, 1
      %p208 = scmp.ne.s32.totalorder %s203, %s205
      %p209 = scmp.eq.s32.totalorder %s27, 0
      %p210 = por %p208, %p209
      %p211 = scmp.ne.s32.totalorder %s203, %s205
      %p212 = scmp.eq.s32.totalorder %s32, 1
      %p213 = por %p211, %p212
      %p214 = scmp.ne.s32.totalorder %s205, %s206
      %p215 = scmp.eq.s32.totalorder %s32, 0
      %p216 = por %p214, %p215
      %p217 = scmp.ne.s32.totalorder %s205, %s206
      %p218 = scmp.eq.s32.totalorder %s33, 1
      %p219 = por %p217, %p218
      %p221 = scmp.ne.s32.totalorder %s206, %s220
      %p222 = scmp.eq.s32.totalorder %s33, 0
      %p223 = por %p221, %p222
      %s225 = sadd.s32 %s224, 1
      %p228 = scmp.eq.s32.totalorder %s27, 1
      %p229 = scmp.ne.s32.totalorder %s224, %s226
      %p230 = scmp.eq.s32.totalorder %s27, 0
      %p231 = por %p229, %p230
      %p232 = scmp.ne.s32.totalorder %s224, %s226
      %p233 = scmp.eq.s32.totalorder %s32, 1
      %p234 = por %p232, %p233
      %p235 = scmp.ne.s32.totalorder %s226, %s227
      %p236 = scmp.eq.s32.totalorder %s32, 0
      %p237 = por %p235, %p236
      %p238 = scmp.ne.s32.totalorder %s226, %s227
      %p239 = scmp.eq.s32.totalorder %s33, 1
      %p240 = por %p238, %p239
      %p242 = scmp.ne.s32.totalorder %s227, %s241
      %p243 = scmp.eq.s32.totalorder %s33, 0
      %p244 = por %p242, %p243
      %s245 = ssub.s32 %s27, %s34
      %p246 = scmp.eq.s32.totalorder %s245, 0
      %s248 = sadd.s32 %s247, 1
      %s249 = scalar_select %p246, %s247, %s248
      %p252 = pneg %p246
      %p253 = scmp.eq.s32.totalorder %s27, 1
      %p254 = por %p252, %p253
      %p255 = scmp.ne.s32.totalorder %s247, %s250
      %p256 = scmp.eq.s32.totalorder %s27, 0
      %p257 = por %p255, %p256
      %p258 = scmp.ne.s32.totalorder %s247, %s250
      %p259 = scmp.eq.s32.totalorder %s32, 1
      %p260 = por %p258, %p259
      %p261 = scmp.ne.s32.totalorder %s250, %s251
      %p262 = scmp.eq.s32.totalorder %s32, 0
      %p263 = por %p261, %p262
      %p264 = scmp.ne.s32.totalorder %s250, %s251
      %p265 = scmp.eq.s32.totalorder %s33, 1
      %p266 = por %p264, %p265
      %p268 = scmp.ne.s32.totalorder %s251, %s267
      %p269 = scmp.eq.s32.totalorder %s33, 0
      %p270 = por %p268, %p269
      %s271 = ssub.s32 %s27, %s34
      %p272 = scmp.eq.s32.totalorder %s271, 0
      %s274 = sadd.s32 %s273, 1
      %s275 = scalar_select %p272, %s273, %s274
      %p278 = pneg %p272
      %p279 = scmp.eq.s32.totalorder %s27, 1
      %p280 = por %p278, %p279
      %p281 = scmp.ne.s32.totalorder %s273, %s276
      %p282 = scmp.eq.s32.totalorder %s27, 0
      %p283 = por %p281, %p282
      %p284 = scmp.ne.s32.totalorder %s273, %s276
      %p285 = scmp.eq.s32.totalorder %s32, 1
      %p286 = por %p284, %p285
      %p287 = scmp.ne.s32.totalorder %s276, %s277
      %p288 = scmp.eq.s32.totalorder %s32, 0
      %p289 = por %p287, %p288
      %p290 = scmp.ne.s32.totalorder %s276, %s277
      %p291 = scmp.eq.s32.totalorder %s33, 1
      %p292 = por %p290, %p291
      %p294 = scmp.ne.s32.totalorder %s277, %s293
      %p295 = scmp.eq.s32.totalorder %s33, 0
      %p296 = por %p294, %p295
      %s297 = ssub.s32 %s27, %s34
      %p298 = scmp.eq.s32.totalorder %s297, 0
      %s300 = sadd.s32 %s299, 1
      %s301 = scalar_select %p298, %s299, %s300
      %p304 = pneg %p298
      %p305 = scmp.eq.s32.totalorder %s27, 1
      %p306 = por %p304, %p305
      %p307 = scmp.ne.s32.totalorder %s299, %s302
      %p308 = scmp.eq.s32.totalorder %s27, 0
      %p309 = por %p307, %p308
      %p310 = scmp.ne.s32.totalorder %s299, %s302
      %p311 = scmp.eq.s32.totalorder %s32, 1
      %p312 = por %p310, %p311
      %p313 = scmp.ne.s32.totalorder %s302, %s303
      %p314 = scmp.eq.s32.totalorder %s32, 0
      %p315 = por %p313, %p314
      %p316 = scmp.ne.s32.totalorder %s302, %s303
      %p317 = scmp.eq.s32.totalorder %s33, 1
      %p318 = por %p316, %p317
      %p320 = scmp.ne.s32.totalorder %s303, %s319
      %p321 = scmp.eq.s32.totalorder %s33, 0
      %p322 = por %p320, %p321
      %s324 = sadd.s32 %s323, 1
      %p327 = scmp.eq.s32.totalorder %s27, 1
      %p328 = scmp.ne.s32.totalorder %s323, %s325
      %p329 = scmp.eq.s32.totalorder %s27, 0
      %p330 = por %p328, %p329
      %p331 = scmp.ne.s32.totalorder %s323, %s325
      %p332 = scmp.eq.s32.totalorder %s32, 1
      %p333 = por %p331, %p332
      %p334 = scmp.ne.s32.totalorder %s325, %s326
      %p335 = scmp.eq.s32.totalorder %s32, 0
      %p336 = por %p334, %p335
      %p337 = scmp.ne.s32.totalorder %s325, %s326
      %p338 = scmp.eq.s32.totalorder %s33, 1
      %p339 = por %p337, %p338
      %p341 = scmp.ne.s32.totalorder %s326, %s340
      %p342 = scmp.eq.s32.totalorder %s33, 0
      %p343 = por %p341, %p342
      %s345 = sadd.s32 %s344, 1
      %p348 = scmp.eq.s32.totalorder %s27, 1
      %p349 = scmp.ne.s32.totalorder %s344, %s346
      %p350 = scmp.eq.s32.totalorder %s27, 0
      %p351 = por %p349, %p350
      %p352 = scmp.ne.s32.totalorder %s344, %s346
      %p353 = scmp.eq.s32.totalorder %s32, 1
      %p354 = por %p352, %p353
      %p355 = scmp.ne.s32.totalorder %s346, %s347
      %p356 = scmp.eq.s32.totalorder %s32, 0
      %p357 = por %p355, %p356
      %p358 = scmp.ne.s32.totalorder %s346, %s347
      %p359 = scmp.eq.s32.totalorder %s33, 1
      %p360 = por %p358, %p359
      %p362 = scmp.ne.s32.totalorder %s347, %s361
      %p363 = scmp.eq.s32.totalorder %s33, 0
      %p364 = por %p362, %p363
      %s366 = sadd.s32 %s365, 1
      %p369 = scmp.eq.s32.totalorder %s27, 1
      %p370 = scmp.ne.s32.totalorder %s365, %s367
      %p371 = scmp.eq.s32.totalorder %s27, 0
      %p372 = por %p370, %p371
      %p373 = scmp.ne.s32.totalorder %s365, %s367
      %p374 = scmp.eq.s32.totalorder %s32, 1
      %p375 = por %p373, %p374
      %p376 = scmp.ne.s32.totalorder %s367, %s368
      %p377 = scmp.eq.s32.totalorder %s32, 0
      %p378 = por %p376, %p377
      %p379 = scmp.ne.s32.totalorder %s367, %s368
      %p380 = scmp.eq.s32.totalorder %s33, 1
      %p381 = por %p379, %p380
      %p383 = scmp.ne.s32.totalorder %s368, %s382
      %p384 = scmp.eq.s32.totalorder %s33, 0
      %p385 = por %p383, %p384
      %s387 = sadd.s32 %s386, 1
      %p390 = scmp.eq.s32.totalorder %s27, 1
      %p391 = scmp.ne.s32.totalorder %s386, %s388
      %p392 = scmp.eq.s32.totalorder %s27, 0
      %p393 = por %p391, %p392
      %p394 = scmp.ne.s32.totalorder %s386, %s388
      %p395 = scmp.eq.s32.totalorder %s32, 1
      %p396 = por %p394, %p395
      %p397 = scmp.ne.s32.totalorder %s388, %s389
      %p398 = scmp.eq.s32.totalorder %s32, 0
      %p399 = por %p397, %p398
      %p400 = scmp.ne.s32.totalorder %s388, %s389
      %p401 = scmp.eq.s32.totalorder %s33, 1
      %p402 = por %p400, %p401
      %p404 = scmp.ne.s32.totalorder %s389, %s403
      %p405 = scmp.eq.s32.totalorder %s33, 0
      %p406 = por %p404, %p405
      %p407 = scmp.le.s32.totalorder 1, %s27
      %p408 = scmp.lt.s32.totalorder %s27, 3
      %p409 = pnand %p407, %p408
      %p410 = pneg %p409
      // Predicated region
      $region9: #{mmada_forward.1} parent=5 // pred_check
        _
      $region10: #{mmada_forward.1} parent=5 // pred_check_branch
        %412 = sbr.rel (%p409) target = $region12
      $region11: #{mmada_forward.1} parent=5 // pred_region
        %s413 = ssub.s32 %s27, 1
        // Predicated region
        $region13: #{mmada_forward.1} parent=11 // pred_check
          %p414 = pneg %p48
        $region14: #{mmada_forward.1} parent=11 // pred_check_branch
          %416 = sbr.rel (%p414) target = $region16
        $region15: #{mmada_forward.1} parent=11 // pred_region
          _
        $region16: #{mmada_forward.1} parent=11 // pred_fallthru
          _
        // Predicated region
        $region17: #{mmada_forward.1} parent=11 // pred_check
          %p417 = pneg %p69
        $region18: #{mmada_forward.1} parent=11 // pred_check_branch
          %419 = sbr.rel (%p417) target = $region20
        $region19: #{mmada_forward.1} parent=11 // pred_region
          _
        $region20: #{mmada_forward.1} parent=11 // pred_fallthru
          _
        // Predicated region
        $region21: #{mmada_forward.1} parent=11 // pred_check
          %p420 = pneg %p90
        $region22: #{mmada_forward.1} parent=11 // pred_check_branch
          %422 = sbr.rel (%p420) target = $region24
        $region23: #{mmada_forward.1} parent=11 // pred_region
          _
        $region24: #{mmada_forward.1} parent=11 // pred_fallthru
          _
        // Predicated region
        $region25: #{mmada_forward.1} parent=11 // pred_check
          %p423 = pneg %p111
        $region26: #{mmada_forward.1} parent=11 // pred_check_branch
          %425 = sbr.rel (%p423) target = $region28
        $region27: #{mmada_forward.1} parent=11 // pred_region
          _
        $region28: #{mmada_forward.1} parent=11 // pred_fallthru
          _
        // Predicated region
        $region29: #{mmada_forward.1} parent=11 // pred_check
          %p426 = pneg %p132
        $region30: #{mmada_forward.1} parent=11 // pred_check_branch
          %428 = sbr.rel (%p426) target = $region32
        $region31: #{mmada_forward.1} parent=11 // pred_region
          _
        $region32: #{mmada_forward.1} parent=11 // pred_fallthru
          _
        // Predicated region
        $region33: #{mmada_forward.1} parent=11 // pred_check
          %p429 = pneg %p153
        $region34: #{mmada_forward.1} parent=11 // pred_check_branch
          %431 = sbr.rel (%p429) target = $region36
        $region35: #{mmada_forward.1} parent=11 // pred_region
          _
        $region36: #{mmada_forward.1} parent=11 // pred_fallthru
          _
        // Predicated region
        $region37: #{mmada_forward.1} parent=11 // pred_check
          %p432 = pneg %p174
        $region38: #{mmada_forward.1} parent=11 // pred_check_branch
          %434 = sbr.rel (%p432) target = $region40
        $region39: #{mmada_forward.1} parent=11 // pred_region
          _
        $region40: #{mmada_forward.1} parent=11 // pred_fallthru
          _
        // Predicated region
        $region41: #{mmada_forward.1} parent=11 // pred_check
          %p435 = pneg %p195
        $region42: #{mmada_forward.1} parent=11 // pred_check_branch
          %437 = sbr.rel (%p435) target = $region44
        $region43: #{mmada_forward.1} parent=11 // pred_region
          _
        $region44: #{mmada_forward.1} parent=11 // pred_fallthru
          _
        // Predicated region
        $region45: #{mmada_forward.1} parent=11 // pred_check
          %p438 = pneg %p216
        $region46: #{mmada_forward.1} parent=11 // pred_check_branch
          %440 = sbr.rel (%p438) target = $region48
        $region47: #{mmada_forward.1} parent=11 // pred_region
          _
        $region48: #{mmada_forward.1} parent=11 // pred_fallthru
          _
        // Predicated region
        $region49: #{mmada_forward.1} parent=11 // pred_check
          %p441 = pneg %p237
        $region50: #{mmada_forward.1} parent=11 // pred_check_branch
          %443 = sbr.rel (%p441) target = $region52
        $region51: #{mmada_forward.1} parent=11 // pred_region
          _
        $region52: #{mmada_forward.1} parent=11 // pred_fallthru
          _
      $region12: #{mmada_forward.1} parent=5 // pred_fallthru
        _
      %p444 = scmp.lt.s32.totalorder %s27, 2
      // Predicated region
      $region53: #{mmada_forward.1} parent=5 // pred_check
        %p445 = pneg %p444
      $region54: #{mmada_forward.1} parent=5 // pred_check_branch
        %447 = sbr.rel (%p445) target = $region56
      $region55: #{mmada_forward.1} parent=5 // pred_region
        // Predicated region
        $region57: #{mmada_forward.1} parent=55 // pred_check
          %p448 = pneg %p257
        $region58: #{mmada_forward.1} parent=55 // pred_check_branch
          %450 = sbr.rel (%p448) target = $region60
        $region59: #{mmada_forward.1} parent=55 // pred_region
          %s451 = sand.u32 %s247, 1
          %s452 = sand.u32 %s247, 1
          %s453 = smul.addr %s452, 64
          %s454 = scalar_lea.vmem [#allocation3], %s453
          %s455 = smul.addr %s27, 4
          %s456 = scalar_lea.vmem %s10, %s455
          // Predicated region
          $region61: #{mmada_forward.1} parent=59 // pred_check
            _
          $region62: #{mmada_forward.1} parent=59 // pred_check_branch
            %458 = sbr.rel (0) target = $region64
          $region63: #{mmada_forward.1} parent=59 // pred_region
            // Predicated region
            $region65: #{mmada_forward.1} parent=63 // pred_check
              _
            $region66: #{mmada_forward.1} parent=63 // pred_check_branch
              %460 = sbr.rel target = $region68
            $region67: #{mmada_forward.1} parent=63 // pred_region
              // Predicated region
              $region80: #{mmada_forward.1} parent=67 // pred_check
                _
              $region81: #{mmada_forward.1} parent=67 // pred_check_branch
                %505 = sbr.rel (0) target = $region83
              $region82: #{mmada_forward.1} parent=67 // pred_region
                loop: start=0, step=1, limit=1
                $region84: #{mmada_forward.1} parent=82 // loop_pre_header
                  _
                $region85: #{mmada_forward.1} parent=82 // loop_header
                  %s507 = sphi 0, %s511
                  %p508 = scmp.ge.s32.totalorder %s507, 1
                  %s512 = sphi %s456, %s456
                  %s513 = sphi %s454, %s454
                $region86: #{mmada_forward.1} parent=82 // loop_header_branch
                  %510 = sbr.rel (%p508) target = $region90
                $region87: #{mmada_forward.1} parent=82 // loop_body
                  _
                $region88: #{mmada_forward.1} parent=82 // loop_footer
                  %s511 = sadd.s32 1, %s507
                $region89: #{mmada_forward.1} parent=82 // loop_footer_branch
                  %506 = sbr.rel target = $region85
                $region90: #{mmada_forward.1} parent=82 // loop_exit
                  _
                loop: start=0, step=1, limit=1
                $region91: #{mmada_forward.1} parent=82 // loop_pre_header
                  _
                $region92: #{mmada_forward.1} parent=82 // loop_header
                  %s516 = sphi 0, %s520
                  %p517 = scmp.ge.s32.totalorder %s516, 1
                  %s521 = sphi %s456, %s456
                  %s522 = sphi %s454, %s454
                $region93: #{mmada_forward.1} parent=82 // loop_header_branch
                  %519 = sbr.rel (%p517) target = $region97
                $region94: #{mmada_forward.1} parent=82 // loop_body
                  %v523 = vld [vmem:[%s521] sm:$0xf]
                  %524 = vst [vmem:[%s522] sm:$0xf] %v523
                  %v525 = vld [vmem:[%s521 + $0x8] sm:$0xf]
                  %526 = vst [vmem:[%s522 + $0x4] sm:$0xf] %v525
                  %v527 = vld [vmem:[%s521 + $0x10] sm:$0xf]
                  %528 = vst [vmem:[%s522 + $0x8] sm:$0xf] %v527
                  %v529 = vld [vmem:[%s521 + $0x18] sm:$0xf]
                  %530 = vst [vmem:[%s522 + $0xc] sm:$0xf] %v529
                  %v531 = vld [vmem:[%s521 + $0x20] sm:$0xf]
                  %532 = vst [vmem:[%s522 + $0x10] sm:$0xf] %v531
                  %v533 = vld [vmem:[%s521 + $0x28] sm:$0xf]
                  %534 = vst [vmem:[%s522 + $0x14] sm:$0xf] %v533
                  %v535 = vld [vmem:[%s521 + $0x30] sm:$0xf]
                  %536 = vst [vmem:[%s522 + $0x18] sm:$0xf] %v535
                  %v537 = vld [vmem:[%s521 + $0x38] sm:$0xf]
                  %538 = vst [vmem:[%s522 + $0x1c] sm:$0xf] %v537
                  %v539 = vld [vmem:[%s521 + $0x40] sm:$0xf]
                  %540 = vst [vmem:[%s522 + $0x20] sm:$0xf] %v539
                  %v541 = vld [vmem:[%s521 + $0x48] sm:$0xf]
                  %542 = vst [vmem:[%s522 + $0x24] sm:$0xf] %v541
                  %v543 = vld [vmem:[%s521 + $0x50] sm:$0xf]
                  %544 = vst [vmem:[%s522 + $0x28] sm:$0xf] %v543
                  %v545 = vld [vmem:[%s521 + $0x58] sm:$0xf]
                  %546 = vst [vmem:[%s522 + $0x2c] sm:$0xf] %v545
                  %v547 = vld [vmem:[%s521 + $0x60] sm:$0xf]
                  %548 = vst [vmem:[%s522 + $0x30] sm:$0xf] %v547
                  %v549 = vld [vmem:[%s521 + $0x68] sm:$0xf]
                  %550 = vst [vmem:[%s522 + $0x34] sm:$0xf] %v549
                  %v551 = vld [vmem:[%s521 + $0x70] sm:$0xf]
                  %552 = vst [vmem:[%s522 + $0x38] sm:$0xf] %v551
                  %v553 = vld [vmem:[%s521 + $0x78] sm:$0xf]
                  %554 = vst [vmem:[%s522 + $0x3c] sm:$0xf] %v553
                $region95: #{mmada_forward.1} parent=82 // loop_footer
                  %s520 = sadd.s32 1, %s516
                $region96: #{mmada_forward.1} parent=82 // loop_footer_branch
                  %515 = sbr.rel target = $region92
                $region97: #{mmada_forward.1} parent=82 // loop_exit
                  _
              $region83: #{mmada_forward.1} parent=67 // pred_fallthru
                _
            $region68: #{mmada_forward.1} parent=63 // pred_fallthru
              _
            // Predicated region
            $region69: #{mmada_forward.1} parent=63 // pred_check
              _
            $region70: #{mmada_forward.1} parent=63 // pred_check_branch
              %462 = sbr.rel (0) target = $region72
            $region71: #{mmada_forward.1} parent=63 // pred_region
              loop: start=0, step=1, limit=1
              $region73: #{mmada_forward.1} parent=71 // loop_pre_header
                _
              $region74: #{mmada_forward.1} parent=71 // loop_header
                %s465 = sphi 0, %s469
                %p466 = scmp.ge.s32.totalorder %s465, 1
                %s470 = sphi %s456, %s456
                %s471 = sphi %s454, %s454
              $region75: #{mmada_forward.1} parent=71 // loop_header_branch
                %468 = sbr.rel (%p466) target = $region79
              $region76: #{mmada_forward.1} parent=71 // loop_body
                %v472 = vld [vmem:[%s470] sm:$0xf]
                %473 = vst [vmem:[%s471] sm:$0xf] %v472
                %v474 = vld [vmem:[%s470 + $0x8] sm:$0xf]
                %475 = vst [vmem:[%s471 + $0x4] sm:$0xf] %v474
                %v476 = vld [vmem:[%s470 + $0x10] sm:$0xf]
                %477 = vst [vmem:[%s471 + $0x8] sm:$0xf] %v476
                %v478 = vld [vmem:[%s470 + $0x18] sm:$0xf]
                %479 = vst [vmem:[%s471 + $0xc] sm:$0xf] %v478
                %v480 = vld [vmem:[%s470 + $0x20] sm:$0xf]
                %481 = vst [vmem:[%s471 + $0x10] sm:$0xf] %v480
                %v482 = vld [vmem:[%s470 + $0x28] sm:$0xf]
                %483 = vst [vmem:[%s471 + $0x14] sm:$0xf] %v482
                %v484 = vld [vmem:[%s470 + $0x30] sm:$0xf]
                %485 = vst [vmem:[%s471 + $0x18] sm:$0xf] %v484
                %v486 = vld [vmem:[%s470 + $0x38] sm:$0xf]
                %487 = vst [vmem:[%s471 + $0x1c] sm:$0xf] %v486
                %v488 = vld [vmem:[%s470 + $0x40] sm:$0xf]
                %489 = vst [vmem:[%s471 + $0x20] sm:$0xf] %v488
                %v490 = vld [vmem:[%s470 + $0x48] sm:$0xf]
                %491 = vst [vmem:[%s471 + $0x24] sm:$0xf] %v490
                %v492 = vld [vmem:[%s470 + $0x50] sm:$0xf]
                %493 = vst [vmem:[%s471 + $0x28] sm:$0xf] %v492
                %v494 = vld [vmem:[%s470 + $0x58] sm:$0xf]
                %495 = vst [vmem:[%s471 + $0x2c] sm:$0xf] %v494
                %v496 = vld [vmem:[%s470 + $0x60] sm:$0xf]
                %497 = vst [vmem:[%s471 + $0x30] sm:$0xf] %v496
                %v498 = vld [vmem:[%s470 + $0x68] sm:$0xf]
                %499 = vst [vmem:[%s471 + $0x34] sm:$0xf] %v498
                %v500 = vld [vmem:[%s470 + $0x70] sm:$0xf]
                %501 = vst [vmem:[%s471 + $0x38] sm:$0xf] %v500
                %v502 = vld [vmem:[%s470 + $0x78] sm:$0xf]
                %503 = vst [vmem:[%s471 + $0x3c] sm:$0xf] %v502
              $region77: #{mmada_forward.1} parent=71 // loop_footer
                %s469 = sadd.s32 1, %s465
              $region78: #{mmada_forward.1} parent=71 // loop_footer_branch
                %464 = sbr.rel target = $region74
              $region79: #{mmada_forward.1} parent=71 // loop_exit
                _
            $region72: #{mmada_forward.1} parent=63 // pred_fallthru
              _
          $region64: #{mmada_forward.1} parent=59 // pred_fallthru
            _
          %555 = vnop
        $region60: #{mmada_forward.1} parent=55 // pred_fallthru
          _
        // Predicated region
        $region98: #{mmada_forward.1} parent=55 // pred_check
          %p556 = pneg %p283
        $region99: #{mmada_forward.1} parent=55 // pred_check_branch
          %558 = sbr.rel (%p556) target = $region101
        $region100: #{mmada_forward.1} parent=55 // pred_region
          %p559 = scmp.lt.s32.totalorder %s27, 1
          %s560 = scalar_select %p559, %s27, 1
          %s561 = scalar_lea.vmem %s11, %s560
        $region101: #{mmada_forward.1} parent=55 // pred_fallthru
          _
      $region56: #{mmada_forward.1} parent=5 // pred_fallthru
        _
      %p562 = scmp.le.s32.totalorder 1, %s27
      %p563 = scmp.lt.s32.totalorder %s27, 3
      %p564 = pnand %p562, %p563
      %p565 = pneg %p564
      // Predicated region
      $region102: #{mmada_forward.1} parent=5 // pred_check
        _
      $region103: #{mmada_forward.1} parent=5 // pred_check_branch
        %567 = sbr.rel (%p564) target = $region105
      $region104: #{mmada_forward.1} parent=5 // pred_region
        %s568 = ssub.s32 %s27, 1
        %s569 = sand.u32 %s250, 1
        %s570 = sand.u32 %s250, 1
        %s571 = smul.addr %s570, 64
        %s572 = scalar_lea.vmem [#allocation3], %s571
        // Predicated region
        $region106: #{mmada_forward.1} parent=104 // pred_check
          %p573 = pneg %p263
        $region107: #{mmada_forward.1} parent=104 // pred_check_branch
          %575 = sbr.rel (%p573) target = $region109
        $region108: #{mmada_forward.1} parent=104 // pred_region
          _
        $region109: #{mmada_forward.1} parent=104 // pred_fallthru
          _
        %p576 = pneg %p48
        %p577 = pneg %p45
        %p578 = pneg %p69
        %p579 = pneg %p66
        %p580 = pneg %p90
        %p581 = pneg %p87
        %p582 = pneg %p111
        %p583 = pneg %p108
        %p584 = pneg %p132
        %p585 = pneg %p129
        %p586 = pneg %p153
        %p587 = pneg %p150
        %p588 = pneg %p174
        %p589 = pneg %p171
        %p590 = pneg %p195
        %p591 = pneg %p192
        %p592 = pneg %p216
        %p593 = pneg %p213
        %p594 = pneg %p237
        %p595 = pneg %p234
        %s596 = sand.u32 %s250, 1
        %s597 = sand.u32 %s250, 1
        %s598 = smul.addr %s597, 64
        %s599 = scalar_lea.vmem [#allocation3], %s598
        %p600 = pneg %p263
        %p601 = pneg %p260
        %p602 = scmp.lt.s32.totalorder %s32, 1
        %s603 = scalar_select %p602, %s32, 1
        %s604 = scalar_lea.vmem %s11, %s603
        %p605 = pneg %p289
        %p606 = pneg %p286
        %p607 = pneg %p315
        %p608 = pneg %p312
        %s609 = sand.u32 %s302, 1
        %s610 = scalar_lea.sflag [#allocation5], %s609
        %s611 = sand.u32 %s302, 1
        %s612 = smul.addr %s611, 8
        %s613 = scalar_lea.vmem [#allocation4], %s612
        %p614 = pneg %p336
        %p615 = pneg %p333
        %p616 = pneg %p357
        %p617 = pneg %p354
        %p618 = pneg %p378
        %p619 = pneg %p375
        %p620 = pneg %p399
        %p621 = pneg %p396
        %p622 = scmp.lt.s32.totalorder %s32, 1
        %s623 = scalar_select %p622, %s32, 1
        %s624 = scalar_lea.vmem %s11, %s623
        %p626 = scmp.eq.s32.totalorder %s32, 0
        // Predicated region
        $region110: #{mmada_forward.1} parent=104 // pred_check
          %p627 = pneg %p626
        $region111: #{mmada_forward.1} parent=104 // pred_check_branch
          %629 = sbr.rel (%p627) target = $region113
        $region112: #{mmada_forward.1} parent=104 // pred_region
          %v630 = vld [vmem:[%s0] sm:$0xff]
          %v631 = vld [vmem:[%s0 + $0x8] sm:$0xff]
          %v632 = vpack.c.bf16 %v631, %v630
          %v633 = vld [vmem:[%s4] sm:$0xf]
          %v634 = vld [vmem:[%s4 + $0x4] sm:$0xf]
          %v635 = vld [vmem:[%s4 + $0x8] sm:$0xf]
          %v636 = vld [vmem:[%s4 + $0xc] sm:$0xf]
          %v637 = vld [vmem:[%s4 + $0x10] sm:$0xf]
          %v638 = vld [vmem:[%s4 + $0x14] sm:$0xf]
          %v639 = vld [vmem:[%s4 + $0x18] sm:$0xf]
          %v640 = vld [vmem:[%s4 + $0x1c] sm:$0xf]
          %v641 = vld [vmem:[%s4 + $0x20] sm:$0xf]
          %v642 = vld [vmem:[%s4 + $0x24] sm:$0xf]
          %v643 = vld [vmem:[%s4 + $0x28] sm:$0xf]
          %v644 = vld [vmem:[%s4 + $0x2c] sm:$0xf]
          %v645 = vld [vmem:[%s4 + $0x30] sm:$0xf]
          %v646 = vld [vmem:[%s4 + $0x34] sm:$0xf]
          %v647 = vld [vmem:[%s4 + $0x38] sm:$0xf]
          %v648 = vld [vmem:[%s4 + $0x3c] sm:$0xf]
          %v649 = vld [vmem:[%s9] sm:$0x1]
          %v651 = vlaneseq
          %v652 = vshrl.u32 %v651, 7
          %v653 = vsub.s32 0, %v652
          %v654 = vrot.slane %v649, %v653
          %v672 = vunpack.c.l.b16 %v633
          %v673 = vunpack.c.l.b16 %v634
          %v674 = vunpack.c.l.b16 %v635
          %v675 = vunpack.c.l.b16 %v636
          %v676 = vunpack.c.l.b16 %v637
          %v677 = vunpack.c.l.b16 %v638
          %v678 = vunpack.c.l.b16 %v639
          %v679 = vunpack.c.l.b16 %v640
          %v680 = vunpack.c.l.b16 %v641
          %v681 = vunpack.c.l.b16 %v642
          %v682 = vunpack.c.l.b16 %v643
          %v683 = vunpack.c.l.b16 %v644
          %v684 = vunpack.c.l.b16 %v645
          %v685 = vunpack.c.l.b16 %v646
          %v686 = vunpack.c.l.b16 %v647
          %v687 = vunpack.c.l.b16 %v648
          %v688 = vpack.c.b16 %v673, %v672
          %v689 = vpack.c.b16 %v675, %v674
          %v690 = vpack.c.b16 %v677, %v676
          %v691 = vpack.c.b16 %v679, %v678
          %v692 = vpack.c.b16 %v681, %v680
          %v693 = vpack.c.b16 %v683, %v682
          %v694 = vpack.c.b16 %v685, %v684
          %v695 = vpack.c.b16 %v687, %v686
          %704 = vmatprep.subr.bf16.mxu0 0
          %705 = vmatpush1.bf16.msra.mxu0 %v688
          %706 = vmatprep.subr.bf16.mxu0 0
          %707 = vmatpush1.bf16.msra.mxu0 %v689
          %708 = vmatprep.subr.bf16.mxu0 0
          %709 = vmatpush1.bf16.msra.mxu0 %v690
          %710 = vmatprep.subr.bf16.mxu0 0
          %711 = vmatpush1.bf16.msra.mxu0 %v691
          %712 = vmatprep.subr.bf16.mxu0 0
          %713 = vmatpush1.bf16.msra.mxu0 %v692
          %714 = vmatprep.subr.bf16.mxu0 0
          %715 = vmatpush1.bf16.msra.mxu0 %v693
          %716 = vmatprep.subr.bf16.mxu0 0
          %717 = vmatpush1.bf16.msra.mxu0 %v694
          %718 = vmatprep.subr.bf16.mxu0 0
          %719 = vmatpush1.bf16.msra.mxu0 %v695
          %720 = vmatprep.subr.bf16.mxu0 0
          %721 = vmatpush1.bf16.msra.mxu0 0
          %722 = vmatprep.subr.bf16.mxu0 0
          %723 = vmatpush1.bf16.msra.mxu0 0
          %724 = vmatprep.subr.bf16.mxu0 0
          %725 = vmatpush1.bf16.msra.mxu0 0
          %726 = vmatprep.subr.bf16.mxu0 0
          %727 = vmatpush1.bf16.msra.mxu0 0
          %728 = vmatprep.subr.bf16.mxu0 0
          %729 = vmatpush1.bf16.msra.mxu0 0
          %730 = vmatprep.subr.bf16.mxu0 0
          %731 = vmatpush1.bf16.msra.mxu0 0
          %732 = vmatprep.subr.bf16.mxu0 0
          %733 = vmatpush1.bf16.msra.mxu0 0
          %734 = vmatprep.subr.bf16.mxu0 0
          %735 = vmatpush1.bf16.msra.mxu0 0
          %736 = vmatprep.mubr.bf16.mxu0 0
          %737 = vmatmul.mubr.bf16.gmra.mrb[0].mxu0 %v632
          %v738 = vpop.f32.mrb[0].mxu0
          %v739 = vadd.f32 %v654, %v738
          %v740 = vpop.f32.mrb[0].mxu0
          %v741 = vpop.f32.mrb[0].mxu0
          %v742 = vadd.f32 %v654, %v741
          %v743 = vpop.f32.mrb[0].mxu0
          %744 = vdwg.mxu0
          %v745 = vmax.f32 %v739, 0.0
          %v746 = vmax.f32 %v742, 0.0
          %v747 = vpack.c.bf16 %v746, %v745
          %748 = vst [vmem:[#allocation2] sm:$0xff] %v747
          %v749 = vld [vmem:[%s1] sm:$0xff]
          %vm750 = vcmask 130048
          %v751 = vsel %vm750, %v749, 0.0
          %752 = vadd.xlane.f32.xlu0 %v751
          %v753 = vpop.xlane.xlu0 %752
          %v754 = vadd.f32 %v753, 1e-05
          %v755 = vrcp.pop %v754
          %v757 = vsel %vm750, %v749, 0
          %759 = vmatprep.subr.mxu0 0.0
          %760 = vmatpush1.msra.mxu0 %v745
          %761 = vmatprep.subr.mxu0 0.0
          %762 = vmatpush1.msra.mxu0 %v746
          %763 = vmatprep.subr.mxu0 0.0
          %764 = vmatpush1.msra.mxu0 0.0
          %765 = vmatprep.subr.mxu0 0.0
          %766 = vmatpush1.msra.mxu0 0.0
          %767 = vmatprep.subr.mxu0 0.0
          %768 = vmatpush1.msra.mxu0 0.0
          %769 = vmatprep.subr.mxu0 0.0
          %770 = vmatpush1.msra.mxu0 0.0
          %771 = vmatprep.subr.mxu0 0.0
          %772 = vmatpush1.msra.mxu0 0.0
          %773 = vmatprep.subr.mxu0 0.0
          %774 = vmatpush1.msra.mxu0 0.0
          %775 = vmatprep.subr.mxu0 0.0
          %776 = vmatpush1.msra.mxu0 0.0
          %777 = vmatprep.subr.mxu0 0.0
          %778 = vmatpush1.msra.mxu0 0.0
          %779 = vmatprep.subr.mxu0 0.0
          %780 = vmatpush1.msra.mxu0 0.0
          %781 = vmatprep.subr.mxu0 0.0
          %782 = vmatpush1.msra.mxu0 0.0
          %783 = vmatprep.subr.mxu0 0.0
          %784 = vmatpush1.msra.mxu0 0.0
          %785 = vmatprep.subr.mxu0 0.0
          %786 = vmatpush1.msra.mxu0 0.0
          %787 = vmatprep.subr.mxu0 0.0
          %788 = vmatpush1.msra.mxu0 0.0
          %789 = vmatprep.subr.mxu0 0.0
          %790 = vmatpush1.msra.mxu0 0.0
          %791 = vmatprep.subr.mxu0 0.0
          %792 = vmatpush1.msra.mxu0 0.0
          %793 = vmatprep.subr.mxu0 0.0
          %794 = vmatpush1.msra.mxu0 0.0
          %795 = vmatprep.subr.mxu0 0.0
          %796 = vmatpush1.msra.mxu0 0.0
          %797 = vmatprep.subr.mxu0 0.0
          %798 = vmatpush1.msra.mxu0 0.0
          %799 = vmatprep.subr.mxu0 0.0
          %800 = vmatpush1.msra.mxu0 0.0
          %801 = vmatprep.subr.mxu0 0.0
          %802 = vmatpush1.msra.mxu0 0.0
          %803 = vmatprep.subr.mxu0 0.0
          %804 = vmatpush1.msra.mxu0 0.0
          %805 = vmatprep.subr.mxu0 0.0
          %806 = vmatpush1.msra.mxu0 0.0
          %807 = vmatprep.subr.mxu0 0.0
          %808 = vmatpush1.msra.mxu0 0.0
          %809 = vmatprep.subr.mxu0 0.0
          %810 = vmatpush1.msra.mxu0 0.0
          %811 = vmatprep.subr.mxu0 0.0
          %812 = vmatpush1.msra.mxu0 0.0
          %813 = vmatprep.subr.mxu0 0.0
          %814 = vmatpush1.msra.mxu0 0.0
          %815 = vmatprep.subr.mxu0 0.0
          %816 = vmatpush1.msra.mxu0 0.0
          %817 = vmatprep.subr.mxu0 0.0
          %818 = vmatpush1.msra.mxu0 0.0
          %819 = vmatprep.subr.mxu0 0.0
          %820 = vmatpush1.msra.mxu0 0.0
          %821 = vmatprep.subr.mxu0 0.0
          %822 = vmatpush1.msra.mxu0 0.0
          %823 = vmatprep.mubr.f32.mxu0 0.0
          %824 = vmatmul.mubr.f32.gmra.mrb[0].mxu0 %v757
          %v825 = vpop.f32.mrb[0].mxu0
          %v826 = vadd.f32 0.0, %v825
          %v827 = vpop.f32.mrb[0].mxu0
          %828 = vdwg.mxu0
          %v829 = vmul.f32 %v826, %v755
          %830 = vst [vmem:[%s13] sm:$0xff] %v829
          %v831 = vld [vmem:[%s2] sm:$0xff]
          %v832 = vld [vmem:[%s2 + $0x10] sm:$0xff]
          %v833 = vld [vmem:[%s2 + $0x20] sm:$0xff]
          %v834 = vld [vmem:[%s2 + $0x30] sm:$0xff]
          %v835 = vld [vmem:[%s2 + $0x8] sm:$0xff]
          %v836 = vld [vmem:[%s2 + $0x18] sm:$0xff]
          %v837 = vld [vmem:[%s2 + $0x28] sm:$0xff]
          %v838 = vld [vmem:[%s2 + $0x38] sm:$0xff]
          %v839 = vpack.c.bf16 %v836, %v835
          %v840 = vpack.c.bf16 %v838, %v837
          %v841 = vld [vmem:[%s5] sm:$0xff]
          %v842 = vld [vmem:[%s5 + $0x8] sm:$0xff]
          %v843 = vld [vmem:[%s5 + $0x10] sm:$0xff]
          %v844 = vld [vmem:[%s5 + $0x18] sm:$0xff]
          %v845 = vld [vmem:[%s5 + $0x20] sm:$0xff]
          %v846 = vld [vmem:[%s5 + $0x28] sm:$0xff]
          %v847 = vld [vmem:[%s5 + $0x30] sm:$0xff]
          %v848 = vld [vmem:[%s5 + $0x38] sm:$0xff]
          %v849 = vld [vmem:[%s9 + $0x1] sm:$0x3]
          %v851 = vlaneseq
          %v852 = vshrl.u32 %v851, 7
          %v853 = vsub.s32 0, %v852
          %v854 = vrot.slane %v849, %v853
          %v855 = vlaneseq
          %v856 = vshrl.u32 %v855, 7
          %v857 = vsub.s32 1, %v856
          %v858 = vrot.slane %v849, %v857
          %v869 = vunpack.c.l.b16 %v841
          %v870 = vunpack.c.h.b16 %v841
          %v871 = vunpack.c.l.b16 %v842
          %v872 = vunpack.c.h.b16 %v842
          %v873 = vunpack.c.l.b16 %v843
          %v874 = vunpack.c.h.b16 %v843
          %v875 = vunpack.c.l.b16 %v844
          %v876 = vunpack.c.h.b16 %v844
          %v877 = vunpack.c.l.b16 %v845
          %v878 = vunpack.c.h.b16 %v845
          %v879 = vunpack.c.l.b16 %v846
          %v880 = vunpack.c.h.b16 %v846
          %v881 = vunpack.c.l.b16 %v847
          %v882 = vunpack.c.h.b16 %v847
          %v883 = vunpack.c.l.b16 %v848
          %v884 = vunpack.c.h.b16 %v848
          %v885 = vpack.c.b16 %v871, %v869
          %v886 = vpack.c.b16 %v872, %v870
          %v887 = vpack.c.b16 %v875, %v873
          %v888 = vpack.c.b16 %v876, %v874
          %v889 = vpack.c.b16 %v879, %v877
          %v890 = vpack.c.b16 %v880, %v878
          %v891 = vpack.c.b16 %v883, %v881
          %v892 = vpack.c.b16 %v884, %v882
          %vm901 = vcmask 523264
          %v903 = vsel %vm901, %v839, 0
          %v906 = vsel %vm901, %v840, 0
          %908 = vmatprep.subr.bf16.mxu0 %v886
          %909 = vmatpush1.bf16.msra.mxu0 %v885
          %910 = vmatprep.subr.bf16.mxu0 %v888
          %911 = vmatpush1.bf16.msra.mxu0 %v887
          %912 = vmatprep.subr.bf16.mxu0 %v890
          %913 = vmatpush1.bf16.msra.mxu0 %v889
          %914 = vmatprep.subr.bf16.mxu0 %v892
          %915 = vmatpush1.bf16.msra.mxu0 %v891
          %916 = vmatprep.subr.bf16.mxu0 0
          %917 = vmatpush1.bf16.msra.mxu0 0
          %918 = vmatprep.subr.bf16.mxu0 0
          %919 = vmatpush1.bf16.msra.mxu0 0
          %920 = vmatprep.subr.bf16.mxu0 0
          %921 = vmatpush1.bf16.msra.mxu0 0
          %922 = vmatprep.subr.bf16.mxu0 0
          %923 = vmatpush1.bf16.msra.mxu0 0
          %924 = vmatprep.subr.bf16.mxu0 0
          %925 = vmatpush1.bf16.msra.mxu0 0
          %926 = vmatprep.subr.bf16.mxu0 0
          %927 = vmatpush1.bf16.msra.mxu0 0
          %928 = vmatprep.subr.bf16.mxu0 0
          %929 = vmatpush1.bf16.msra.mxu0 0
          %930 = vmatprep.subr.bf16.mxu0 0
          %931 = vmatpush1.bf16.msra.mxu0 0
          %932 = vmatprep.subr.bf16.mxu0 0
          %933 = vmatpush1.bf16.msra.mxu0 0
          %934 = vmatprep.subr.bf16.mxu0 0
          %935 = vmatpush1.bf16.msra.mxu0 0
          %936 = vmatprep.subr.bf16.mxu0 0
          %937 = vmatpush1.bf16.msra.mxu0 0
          %938 = vmatprep.subr.bf16.mxu0 0
          %939 = vmatpush1.bf16.msra.mxu0 0
          %940 = vmatprep.mubr.bf16.mxu0 0
          %941 = vmatmul.mubr.bf16.gmra.mrb[0].mxu0 %v903
          %v942 = vpop.f32.mrb[0].mxu0
          %v943 = vadd.f32 %v854, %v942
          %v944 = vpop.f32.mrb[0].mxu0
          %v945 = vadd.f32 %v858, %v944
          %v946 = vpop.f32.mrb[0].mxu0
          %v947 = vadd.f32 %v854, %v946
          %v948 = vpop.f32.mrb[0].mxu0
          %v949 = vadd.f32 %v858, %v948
          %950 = vmatprep.mubr.bf16.mxu0 0
          %951 = vmatmul.mubr.bf16.gmra.mrb[0].mxu0 %v906
          %v952 = vpop.f32.mrb[0].mxu0
          %v953 = vadd.f32 %v854, %v952
          %v954 = vpop.f32.mrb[0].mxu0
          %v955 = vadd.f32 %v858, %v954
          %v956 = vpop.f32.mrb[0].mxu0
          %v957 = vadd.f32 %v854, %v956
          %v958 = vpop.f32.mrb[0].mxu0
          %v959 = vadd.f32 %v858, %v958
          %960 = vdwg.mxu0
          %v961 = vld [vmem:[%s3] ss:$4 sm:$0x3]
          %963 = vset.pattern.permute.xlu0 64
          %964 = vperm.xlu0 %963, %v835
          %v965 = vpop.permute.xlu0 %964
          %968 = vset.pattern.permute.xlu0 64
          %969 = vperm.xlu0 %968, %v836
          %v970 = vpop.permute.xlu0 %969
          %973 = vset.pattern.permute.xlu0 64
          %974 = vperm.xlu0 %973, %v837
          %v975 = vpop.permute.xlu0 %974
          %978 = vset.pattern.permute.xlu0 64
          %979 = vperm.xlu0 %978, %v838
          %v980 = vpop.permute.xlu0 %979
          %v983 = vlaneseq
          %v984 = vshrl.u32 %v983, 7
          %v985 = vsub.s32 0, %v984
          %v986 = vrot.slane %v961, %v985
          %v987 = vlaneseq
          %v988 = vshrl.u32 %v987, 7
          %v989 = vsub.s32 1, %v988
          %v990 = vrot.slane %v961, %v989
          %v993 = vmul.f32 %v965, %v986
          %v994 = vmul.f32 %v965, %v990
          %v995 = vmul.f32 %v970, %v986
          %v996 = vmul.f32 %v970, %v990
          %v997 = vmul.f32 %v975, %v986
          %v998 = vmul.f32 %v975, %v990
          %v999 = vmul.f32 %v980, %v986
          %v1000 = vmul.f32 %v980, %v990
          %v1001 = vadd.f32 %v943, %v993
          %v1002 = vadd.f32 %v945, %v994
          %v1003 = vadd.f32 %v947, %v995
          %v1004 = vadd.f32 %v949, %v996
          %v1005 = vadd.f32 %v953, %v997
          %v1006 = vadd.f32 %v955, %v998
          %v1007 = vadd.f32 %v957, %v999
          %v1008 = vadd.f32 %v959, %v1000
          %s1009 = scalar_lea.vmem %s3, 1
          %v1010 = vld [vmem:[%s1009] ss:$4 sm:$0x3]
          %1011 = vset.pattern.permute.xlu0 65
          %1012 = vperm.xlu0 %1011, %v835
          %v1013 = vpop.permute.xlu0 %1012
          %1015 = vset.pattern.permute.xlu0 65
          %1016 = vperm.xlu0 %1015, %v836
          %v1017 = vpop.permute.xlu0 %1016
          %1019 = vset.pattern.permute.xlu0 65
          %1020 = vperm.xlu0 %1019, %v837
          %v1021 = vpop.permute.xlu0 %1020
          %1023 = vset.pattern.permute.xlu0 65
          %1024 = vperm.xlu0 %1023, %v838
          %v1025 = vpop.permute.xlu0 %1024
          %v1028 = vlaneseq
          %v1029 = vshrl.u32 %v1028, 7
          %v1030 = vsub.s32 0, %v1029
          %v1031 = vrot.slane %v1010, %v1030
          %v1032 = vlaneseq
          %v1033 = vshrl.u32 %v1032, 7
          %v1034 = vsub.s32 1, %v1033
          %v1035 = vrot.slane %v1010, %v1034
          %v1038 = vmul.f32 %v1013, %v1031
          %v1039 = vmul.f32 %v1013, %v1035
          %v1040 = vmul.f32 %v1017, %v1031
          %v1041 = vmul.f32 %v1017, %v1035
          %v1042 = vmul.f32 %v1021, %v1031
          %v1043 = vmul.f32 %v1021, %v1035
          %v1044 = vmul.f32 %v1025, %v1031
          %v1045 = vmul.f32 %v1025, %v1035
          %v1046 = vadd.f32 %v1001, %v1038
          %v1047 = vadd.f32 %v1002, %v1039
          %v1048 = vadd.f32 %v1003, %v1040
          %v1049 = vadd.f32 %v1004, %v1041
          %v1050 = vadd.f32 %v1005, %v1042
          %v1051 = vadd.f32 %v1006, %v1043
          %v1052 = vadd.f32 %v1007, %v1044
          %v1053 = vadd.f32 %v1008, %v1045
          %s1054 = scalar_lea.vmem %s3, 2
          %v1055 = vld [vmem:[%s1054] ss:$4 sm:$0x3]
          %1056 = vset.pattern.permute.xlu0 66
          %1057 = vperm.xlu0 %1056, %v835
          %v1058 = vpop.permute.xlu0 %1057
          %1060 = vset.pattern.permute.xlu0 66
          %1061 = vperm.xlu0 %1060, %v836
          %v1062 = vpop.permute.xlu0 %1061
          %1064 = vset.pattern.permute.xlu0 66
          %1065 = vperm.xlu0 %1064, %v837
          %v1066 = vpop.permute.xlu0 %1065
          %1068 = vset.pattern.permute.xlu0 66
          %1069 = vperm.xlu0 %1068, %v838
          %v1070 = vpop.permute.xlu0 %1069
          %v1073 = vlaneseq
          %v1074 = vshrl.u32 %v1073, 7
          %v1075 = vsub.s32 0, %v1074
          %v1076 = vrot.slane %v1055, %v1075
          %v1077 = vlaneseq
          %v1078 = vshrl.u32 %v1077, 7
          %v1079 = vsub.s32 1, %v1078
          %v1080 = vrot.slane %v1055, %v1079
          %v1083 = vmul.f32 %v1058, %v1076
          %v1084 = vmul.f32 %v1058, %v1080
          %v1085 = vmul.f32 %v1062, %v1076
          %v1086 = vmul.f32 %v1062, %v1080
          %v1087 = vmul.f32 %v1066, %v1076
          %v1088 = vmul.f32 %v1066, %v1080
          %v1089 = vmul.f32 %v1070, %v1076
          %v1090 = vmul.f32 %v1070, %v1080
          %v1091 = vadd.f32 %v1046, %v1083
          %v1092 = vadd.f32 %v1047, %v1084
          %v1093 = vadd.f32 %v1048, %v1085
          %v1094 = vadd.f32 %v1049, %v1086
          %v1095 = vadd.f32 %v1050, %v1087
          %v1096 = vadd.f32 %v1051, %v1088
          %v1097 = vadd.f32 %v1052, %v1089
          %v1098 = vadd.f32 %v1053, %v1090
          %v1099 = vmax.f32 %v1091, 0.0
          %v1100 = vmax.f32 %v1092, 0.0
          %v1101 = vmax.f32 %v1093, 0.0
          %v1102 = vmax.f32 %v1094, 0.0
          %v1103 = vmax.f32 %v1095, 0.0
          %v1104 = vmax.f32 %v1096, 0.0
          %v1105 = vmax.f32 %v1097, 0.0
          %v1106 = vmax.f32 %v1098, 0.0
          %v1107 = vpack.c.bf16 %v1101, %v1099
          %v1108 = vpack.c.bf16 %v1102, %v1100
          %v1109 = vpack.c.bf16 %v1105, %v1103
          %v1110 = vpack.c.bf16 %v1106, %v1104
          %v1111 = vld [vmem:[%s6] sm:$0xf]
          %v1112 = vld [vmem:[%s6 + $0x4] sm:$0xf]
          %v1113 = vld [vmem:[%s6 + $0x8] sm:$0xf]
          %v1114 = vld [vmem:[%s6 + $0xc] sm:$0xf]
          %v1115 = vld [vmem:[%s6 + $0x10] sm:$0xf]
          %v1116 = vld [vmem:[%s6 + $0x14] sm:$0xf]
          %v1117 = vld [vmem:[%s6 + $0x18] sm:$0xf]
          %v1118 = vld [vmem:[%s6 + $0x1c] sm:$0xf]
          %v1119 = vld [vmem:[%s6 + $0x20] sm:$0xf]
          %v1120 = vld [vmem:[%s6 + $0x24] sm:$0xf]
          %v1121 = vld [vmem:[%s6 + $0x28] sm:$0xf]
          %v1122 = vld [vmem:[%s6 + $0x2c] sm:$0xf]
          %v1123 = vld [vmem:[%s6 + $0x30] sm:$0xf]
          %v1124 = vld [vmem:[%s6 + $0x34] sm:$0xf]
          %v1125 = vld [vmem:[%s6 + $0x38] sm:$0xf]
          %v1126 = vld [vmem:[%s6 + $0x3c] sm:$0xf]
          %v1127 = vld [vmem:[%s6 + $0x40] sm:$0xf]
          %v1128 = vld [vmem:[%s6 + $0x44] sm:$0xf]
          %v1129 = vld [vmem:[%s6 + $0x48] sm:$0xf]
          %v1130 = vld [vmem:[%s6 + $0x4c] sm:$0xf]
          %v1131 = vld [vmem:[%s6 + $0x50] sm:$0xf]
          %v1132 = vld [vmem:[%s6 + $0x54] sm:$0xf]
          %v1133 = vld [vmem:[%s6 + $0x58] sm:$0xf]
          %v1134 = vld [vmem:[%s6 + $0x5c] sm:$0xf]
          %v1135 = vld [vmem:[%s6 + $0x60] sm:$0xf]
          %v1136 = vld [vmem:[%s6 + $0x64] sm:$0xf]
          %v1137 = vld [vmem:[%s6 + $0x68] sm:$0xf]
          %v1138 = vld [vmem:[%s6 + $0x6c] sm:$0xf]
          %v1139 = vld [vmem:[%s6 + $0x70] sm:$0xf]
          %v1140 = vld [vmem:[%s6 + $0x74] sm:$0xf]
          %v1141 = vld [vmem:[%s6 + $0x78] sm:$0xf]
          %v1142 = vld [vmem:[%s6 + $0x7c] sm:$0xf]
          %v1143 = vld [vmem:[%s9 + $0x3] sm:$0x1]
          %v1145 = vlaneseq
          %v1146 = vshrl.u32 %v1145, 7
          %v1147 = vsub.s32 0, %v1146
          %v1148 = vrot.slane %v1143, %v1147
          %v1182 = vunpack.c.l.b16 %v1111
          %v1183 = vunpack.c.l.b16 %v1112
          %v1184 = vunpack.c.l.b16 %v1113
          %v1185 = vunpack.c.l.b16 %v1114
          %v1186 = vunpack.c.l.b16 %v1115
          %v1187 = vunpack.c.l.b16 %v1116
          %v1188 = vunpack.c.l.b16 %v1117
          %v1189 = vunpack.c.l.b16 %v1118
          %v1190 = vunpack.c.l.b16 %v1119
          %v1191 = vunpack.c.l.b16 %v1120
          %v1192 = vunpack.c.l.b16 %v1121
          %v1193 = vunpack.c.l.b16 %v1122
          %v1194 = vunpack.c.l.b16 %v1123
          %v1195 = vunpack.c.l.b16 %v1124
          %v1196 = vunpack.c.l.b16 %v1125
          %v1197 = vunpack.c.l.b16 %v1126
          %v1198 = vunpack.c.l.b16 %v1127
          %v1199 = vunpack.c.l.b16 %v1128
          %v1200 = vunpack.c.l.b16 %v1129
          %v1201 = vunpack.c.l.b16 %v1130
          %v1202 = vunpack.c.l.b16 %v1131
          %v1203 = vunpack.c.l.b16 %v1132
          %v1204 = vunpack.c.l.b16 %v1133
          %v1205 = vunpack.c.l.b16 %v1134
          %v1206 = vunpack.c.l.b16 %v1135
          %v1207 = vunpack.c.l.b16 %v1136
          %v1208 = vunpack.c.l.b16 %v1137
          %v1209 = vunpack.c.l.b16 %v1138
          %v1210 = vunpack.c.l.b16 %v1139
          %v1211 = vunpack.c.l.b16 %v1140
          %v1212 = vunpack.c.l.b16 %v1141
          %v1213 = vunpack.c.l.b16 %v1142
          %v1214 = vpack.c.b16 %v1183, %v1182
          %v1215 = vpack.c.b16 %v1185, %v1184
          %v1216 = vpack.c.b16 %v1187, %v1186
          %v1217 = vpack.c.b16 %v1189, %v1188
          %v1218 = vpack.c.b16 %v1191, %v1190
          %v1219 = vpack.c.b16 %v1193, %v1192
          %v1220 = vpack.c.b16 %v1195, %v1194
          %v1221 = vpack.c.b16 %v1197, %v1196
          %v1222 = vpack.c.b16 %v1199, %v1198
          %v1223 = vpack.c.b16 %v1201, %v1200
          %v1224 = vpack.c.b16 %v1203, %v1202
          %v1225 = vpack.c.b16 %v1205, %v1204
          %v1226 = vpack.c.b16 %v1207, %v1206
          %v1227 = vpack.c.b16 %v1209, %v1208
          %v1228 = vpack.c.b16 %v1211, %v1210
          %v1229 = vpack.c.b16 %v1213, %v1212
          %1246 = vmatprep.subr.bf16.mxu0 0
          %1247 = vmatpush1.bf16.msra.mxu0 %v1214
          %1248 = vmatprep.subr.bf16.mxu0 0
          %1249 = vmatpush1.bf16.msra.mxu0 %v1215
          %1250 = vmatprep.subr.bf16.mxu0 0
          %1251 = vmatpush1.bf16.msra.mxu0 %v1216
          %1252 = vmatprep.subr.bf16.mxu0 0
          %1253 = vmatpush1.bf16.msra.mxu0 %v1217
          %1254 = vmatprep.subr.bf16.mxu0 0
          %1255 = vmatpush1.bf16.msra.mxu0 %v1218
          %1256 = vmatprep.subr.bf16.mxu0 0
          %1257 = vmatpush1.bf16.msra.mxu0 %v1219
          %1258 = vmatprep.subr.bf16.mxu0 0
          %1259 = vmatpush1.bf16.msra.mxu0 %v1220
          %1260 = vmatprep.subr.bf16.mxu0 0
          %1261 = vmatpush1.bf16.msra.mxu0 %v1221
          %1262 = vmatprep.subr.bf16.mxu0 0
          %1263 = vmatpush1.bf16.msra.mxu0 %v1222
          %1264 = vmatprep.subr.bf16.mxu0 0
          %1265 = vmatpush1.bf16.msra.mxu0 %v1223
          %1266 = vmatprep.subr.bf16.mxu0 0
          %1267 = vmatpush1.bf16.msra.mxu0 %v1224
          %1268 = vmatprep.subr.bf16.mxu0 0
          %1269 = vmatpush1.bf16.msra.mxu0 %v1225
          %1270 = vmatprep.subr.bf16.mxu0 0
          %1271 = vmatpush1.bf16.msra.mxu0 %v1226
          %1272 = vmatprep.subr.bf16.mxu0 0
          %1273 = vmatpush1.bf16.msra.mxu0 %v1227
          %1274 = vmatprep.subr.bf16.mxu0 0
          %1275 = vmatpush1.bf16.msra.mxu0 %v1228
          %1276 = vmatprep.subr.bf16.mxu0 0
          %1277 = vmatpush1.bf16.msra.mxu0 %v1229
          %1278 = vmatprep.mubr.bf16.mxu0 %v1108
          %1279 = vmatmul.mubr.bf16.gmra.mrb[0].mxu0 %v1107
          %v1280 = vpop.f32.mrb[0].mxu0
          %v1281 = vadd.f32 %v1148, %v1280
          %v1282 = vpop.f32.mrb[0].mxu0
          %v1283 = vpop.f32.mrb[0].mxu0
          %v1284 = vadd.f32 %v1148, %v1283
          %v1285 = vpop.f32.mrb[0].mxu0
          %1286 = vmatprep.mubr.bf16.mxu0 %v1110
          %1287 = vmatmul.mubr.bf16.gmra.mrb[0].mxu0 %v1109
          %v1288 = vpop.f32.mrb[0].mxu0
          %v1289 = vadd.f32 %v1148, %v1288
          %v1290 = vpop.f32.mrb[0].mxu0
          %v1291 = vpop.f32.mrb[0].mxu0
          %v1292 = vadd.f32 %v1148, %v1291
          %v1293 = vpop.f32.mrb[0].mxu0
          %1294 = vdwg.mxu0
          %v1295 = vadd.f32 %v1281, %v831
          %v1296 = vadd.f32 %v1284, %v832
          %v1297 = vadd.f32 %v1289, %v833
          %v1298 = vadd.f32 %v1292, %v834
          %1299 = vst [vmem:[#allocation6] sm:$0xff] %v1295
          %1300 = vst [vmem:[#allocation6 + $0x8] sm:$0xff] %v1296
          %1301 = vst [vmem:[#allocation6 + $0x10] sm:$0xff] %v1297
          %1302 = vst [vmem:[#allocation6 + $0x18] sm:$0xff] %v1298
          %v1303 = vld [vmem:[%s1] sm:$0xff]
          %1305 = vrot.lane.b32.xlu0 %v1303, 112
          %v1306 = vpop.permute.xlu0 %1305
          %vm1308 = vcmask 261120
          %v1309 = vsel %vm1308, %v1306, 0.0
          %1310 = vadd.xlane.f32.xlu0 %v1309
          %v1311 = vpop.xlane.xlu0 %1310
          %v1312 = vadd.f32 %v1311, 1e-05
          %v1313 = vrcp.pop %v1312
          %v1314 = vsel %vm1308, %v1306, 0
          %1316 = vmatprep.subr.mxu0 0.0
          %1317 = vmatpush1.msra.mxu0 %v1295
          %1318 = vmatprep.subr.mxu0 0.0
          %1319 = vmatpush1.msra.mxu0 %v1296
          %1320 = vmatprep.subr.mxu0 0.0
          %1321 = vmatpush1.msra.mxu0 %v1297
          %1322 = vmatprep.subr.mxu0 0.0
          %1323 = vmatpush1.msra.mxu0 %v1298
          %1324 = vmatprep.subr.mxu0 0.0
          %1325 = vmatpush1.msra.mxu0 0.0
          %1326 = vmatprep.subr.mxu0 0.0
          %1327 = vmatpush1.msra.mxu0 0.0
          %1328 = vmatprep.subr.mxu0 0.0
          %1329 = vmatpush1.msra.mxu0 0.0
          %1330 = vmatprep.subr.mxu0 0.0
          %1331 = vmatpush1.msra.mxu0 0.0
          %1332 = vmatprep.subr.mxu0 0.0
          %1333 = vmatpush1.msra.mxu0 0.0
          %1334 = vmatprep.subr.mxu0 0.0
          %1335 = vmatpush1.msra.mxu0 0.0
          %1336 = vmatprep.subr.mxu0 0.0
          %1337 = vmatpush1.msra.mxu0 0.0
          %1338 = vmatprep.subr.mxu0 0.0
          %1339 = vmatpush1.msra.mxu0 0.0
          %1340 = vmatprep.subr.mxu0 0.0
          %1341 = vmatpush1.msra.mxu0 0.0
          %1342 = vmatprep.subr.mxu0 0.0
          %1343 = vmatpush1.msra.mxu0 0.0
          %1344 = vmatprep.subr.mxu0 0.0
          %1345 = vmatpush1.msra.mxu0 0.0
          %1346 = vmatprep.subr.mxu0 0.0
          %1347 = vmatpush1.msra.mxu0 0.0
          %1348 = vmatprep.subr.mxu0 0.0
          %1349 = vmatpush1.msra.mxu0 0.0
          %1350 = vmatprep.subr.mxu0 0.0
          %1351 = vmatpush1.msra.mxu0 0.0
          %1352 = vmatprep.subr.mxu0 0.0
          %1353 = vmatpush1.msra.mxu0 0.0
          %1354 = vmatprep.subr.mxu0 0.0
          %1355 = vmatpush1.msra.mxu0 0.0
          %1356 = vmatprep.subr.mxu0 0.0
          %1357 = vmatpush1.msra.mxu0 0.0
          %1358 = vmatprep.subr.mxu0 0.0
          %1359 = vmatpush1.msra.mxu0 0.0
          %1360 = vmatprep.subr.mxu0 0.0
          %1361 = vmatpush1.msra.mxu0 0.0
          %1362 = vmatprep.subr.mxu0 0.0
          %1363 = vmatpush1.msra.mxu0 0.0
          %1364 = vmatprep.subr.mxu0 0.0
          %1365 = vmatpush1.msra.mxu0 0.0
          %1366 = vmatprep.subr.mxu0 0.0
          %1367 = vmatpush1.msra.mxu0 0.0
          %1368 = vmatprep.subr.mxu0 0.0
          %1369 = vmatpush1.msra.mxu0 0.0
          %1370 = vmatprep.subr.mxu0 0.0
          %1371 = vmatpush1.msra.mxu0 0.0
          %1372 = vmatprep.subr.mxu0 0.0
          %1373 = vmatpush1.msra.mxu0 0.0
          %1374 = vmatprep.subr.mxu0 0.0
          %1375 = vmatpush1.msra.mxu0 0.0
          %1376 = vmatprep.subr.mxu0 0.0
          %1377 = vmatpush1.msra.mxu0 0.0
          %1378 = vmatprep.subr.mxu0 0.0
          %1379 = vmatpush1.msra.mxu0 0.0
          %1380 = vmatprep.mubr.f32.mxu0 0.0
          %1381 = vmatmul.mubr.f32.gmra.mrb[0].mxu0 %v1314
          %v1382 = vpop.f32.mrb[0].mxu0
          %v1383 = vadd.f32 0.0, %v1382
          %v1384 = vpop.f32.mrb[0].mxu0
          %1385 = vdwg.mxu0
          %v1386 = vmul.f32 %v1383, %v1313
          %1387 = vst [vmem:[%s14] sm:$0xff] %v1386
          %v1388 = vpack.c.bf16 %v829, %v829
          %v1389 = vld [vmem:[%s7] sm:$0xff]
          %v1390 = vld [vmem:[%s7 + $0x8] sm:$0xff]
          %v1391 = vld [vmem:[%s7 + $0x10] sm:$0xff]
          %v1392 = vld [vmem:[%s7 + $0x18] sm:$0xff]
          %v1393 = vld [vmem:[%s7 + $0x20] sm:$0xff]
          %v1394 = vld [vmem:[%s7 + $0x28] sm:$0xff]
          %v1395 = vld [vmem:[%s7 + $0x30] sm:$0xff]
          %v1396 = vld [vmem:[%s7 + $0x38] sm:$0xff]
          %v1397 = vld [vmem:[%s7 + $0x40] sm:$0xff]
          %v1398 = vld [vmem:[%s7 + $0x48] sm:$0xff]
          %v1399 = vld [vmem:[%s7 + $0x50] sm:$0xff]
          %v1400 = vld [vmem:[%s7 + $0x58] sm:$0xff]
          %v1401 = vld [vmem:[%s7 + $0x60] sm:$0xff]
          %v1402 = vld [vmem:[%s7 + $0x68] sm:$0xff]
          %v1403 = vld [vmem:[%s7 + $0x70] sm:$0xff]
          %v1404 = vld [vmem:[%s7 + $0x78] sm:$0xff]
          %v1405 = vpack.c.bf16 %v1386, %v1386
          %v1406 = vld [vmem:[%s7 + $0x80] sm:$0xff]
          %v1407 = vld [vmem:[%s7 + $0x88] sm:$0xff]
          %v1408 = vld [vmem:[%s7 + $0x90] sm:$0xff]
          %v1409 = vld [vmem:[%s7 + $0x98] sm:$0xff]
          %v1410 = vld [vmem:[%s7 + $0xa0] sm:$0xff]
          %v1411 = vld [vmem:[%s7 + $0xa8] sm:$0xff]
          %v1412 = vld [vmem:[%s7 + $0xb0] sm:$0xff]
          %v1413 = vld [vmem:[%s7 + $0xb8] sm:$0xff]
          %v1414 = vld [vmem:[%s7 + $0xc0] sm:$0xff]
          %v1415 = vld [vmem:[%s7 + $0xc8] sm:$0xff]
          %v1416 = vld [vmem:[%s7 + $0xd0] sm:$0xff]
          %v1417 = vld [vmem:[%s7 + $0xd8] sm:$0xff]
          %v1418 = vld [vmem:[%s7 + $0xe0] sm:$0xff]
          %v1419 = vld [vmem:[%s7 + $0xe8] sm:$0xff]
          %v1420 = vld [vmem:[%s7 + $0xf0] sm:$0xff]
          %v1421 = vld [vmem:[%s7 + $0xf8] sm:$0xff]
          %v1438 = vunpack.c.l.b16 %v1406
          %v1439 = vunpack.c.h.b16 %v1406
          %v1440 = vunpack.c.l.b16 %v1407
          %v1441 = vunpack.c.h.b16 %v1407
          %v1442 = vunpack.c.l.b16 %v1408
          %v1443 = vunpack.c.h.b16 %v1408
          %v1444 = vunpack.c.l.b16 %v1409
          %v1445 = vunpack.c.h.b16 %v1409
          %v1446 = vunpack.c.l.b16 %v1410
          %v1447 = vunpack.c.h.b16 %v1410
          %v1448 = vunpack.c.l.b16 %v1411
          %v1449 = vunpack.c.h.b16 %v1411
          %v1450 = vunpack.c.l.b16 %v1412
          %v1451 = vunpack.c.h.b16 %v1412
          %v1452 = vunpack.c.l.b16 %v1413
          %v1453 = vunpack.c.h.b16 %v1413
          %v1454 = vunpack.c.l.b16 %v1414
          %v1455 = vunpack.c.h.b16 %v1414
          %v1456 = vunpack.c.l.b16 %v1415
          %v1457 = vunpack.c.h.b16 %v1415
          %v1458 = vunpack.c.l.b16 %v1416
          %v1459 = vunpack.c.h.b16 %v1416
          %v1460 = vunpack.c.l.b16 %v1417
          %v1461 = vunpack.c.h.b16 %v1417
          %v1462 = vunpack.c.l.b16 %v1418
          %v1463 = vunpack.c.h.b16 %v1418
          %v1464 = vunpack.c.l.b16 %v1419
          %v1465 = vunpack.c.h.b16 %v1419
          %v1466 = vunpack.c.l.b16 %v1420
          %v1467 = vunpack.c.h.b16 %v1420
          %v1468 = vunpack.c.l.b16 %v1421
          %v1469 = vunpack.c.h.b16 %v1421
          %v1470 = vpack.c.b16 %v1440, %v1438
          %v1471 = vpack.c.b16 %v1441, %v1439
          %v1472 = vpack.c.b16 %v1444, %v1442
          %v1473 = vpack.c.b16 %v1445, %v1443
          %v1474 = vpack.c.b16 %v1448, %v1446
          %v1475 = vpack.c.b16 %v1449, %v1447
          %v1476 = vpack.c.b16 %v1452, %v1450
          %v1477 = vpack.c.b16 %v1453, %v1451
          %v1478 = vpack.c.b16 %v1456, %v1454
          %v1479 = vpack.c.b16 %v1457, %v1455
          %v1480 = vpack.c.b16 %v1460, %v1458
          %v1481 = vpack.c.b16 %v1461, %v1459
          %v1482 = vpack.c.b16 %v1464, %v1462
          %v1483 = vpack.c.b16 %v1465, %v1463
          %v1484 = vpack.c.b16 %v1468, %v1466
          %v1485 = vpack.c.b16 %v1469, %v1467
          %1502 = vmatprep.subr.bf16.mxu0 %v1471
          %1503 = vmatpush1.bf16.msra.mxu0 %v1470
          %1504 = vmatprep.subr.bf16.mxu0 %v1473
          %1505 = vmatpush1.bf16.msra.mxu0 %v1472
          %1506 = vmatprep.subr.bf16.mxu0 %v1475
          %1507 = vmatpush1.bf16.msra.mxu0 %v1474
          %1508 = vmatprep.subr.bf16.mxu0 %v1477
          %1509 = vmatpush1.bf16.msra.mxu0 %v1476
          %1510 = vmatprep.subr.bf16.mxu0 %v1479
          %1511 = vmatpush1.bf16.msra.mxu0 %v1478
          %1512 = vmatprep.subr.bf16.mxu0 %v1481
          %1513 = vmatpush1.bf16.msra.mxu0 %v1480
          %1514 = vmatprep.subr.bf16.mxu0 %v1483
          %1515 = vmatpush1.bf16.msra.mxu0 %v1482
          %1516 = vmatprep.subr.bf16.mxu0 %v1485
          %1517 = vmatpush1.bf16.msra.mxu0 %v1484
          %1518 = vmatprep.subr.bf16.mxu0 0
          %1519 = vmatpush1.bf16.msra.mxu0 0
          %1520 = vmatprep.subr.bf16.mxu0 0
          %1521 = vmatpush1.bf16.msra.mxu0 0
          %1522 = vmatprep.subr.bf16.mxu0 0
          %1523 = vmatpush1.bf16.msra.mxu0 0
          %1524 = vmatprep.subr.bf16.mxu0 0
          %1525 = vmatpush1.bf16.msra.mxu0 0
          %1526 = vmatprep.subr.bf16.mxu0 0
          %1527 = vmatpush1.bf16.msra.mxu0 0
          %1528 = vmatprep.subr.bf16.mxu0 0
          %1529 = vmatpush1.bf16.msra.mxu0 0
          %1530 = vmatprep.subr.bf16.mxu0 0
          %1531 = vmatpush1.bf16.msra.mxu0 0
          %1532 = vmatprep.subr.bf16.mxu0 0
          %1533 = vmatpush1.bf16.msra.mxu0 0
          %1534 = vmatprep.mubr.bf16.mxu0 0
          %1535 = vmatmul.mubr.bf16.gmra.mrb[0].mxu0 %v1405
          %v1536 = vpop.f32.mrb[0].mxu0
          %v1537 = vadd.f32 0.0, %v1536
          %v1538 = vpop.f32.mrb[0].mxu0
          %v1539 = vadd.f32 0.0, %v1538
          %v1540 = vpop.f32.mrb[0].mxu0
          %v1541 = vpop.f32.mrb[0].mxu0
          %1542 = vdwg.mxu0
          %v1559 = vunpack.c.l.b16 %v1389
          %v1560 = vunpack.c.h.b16 %v1389
          %v1561 = vunpack.c.l.b16 %v1390
          %v1562 = vunpack.c.h.b16 %v1390
          %v1563 = vunpack.c.l.b16 %v1391
          %v1564 = vunpack.c.h.b16 %v1391
          %v1565 = vunpack.c.l.b16 %v1392
          %v1566 = vunpack.c.h.b16 %v1392
          %v1567 = vunpack.c.l.b16 %v1393
          %v1568 = vunpack.c.h.b16 %v1393
          %v1569 = vunpack.c.l.b16 %v1394
          %v1570 = vunpack.c.h.b16 %v1394
          %v1571 = vunpack.c.l.b16 %v1395
          %v1572 = vunpack.c.h.b16 %v1395
          %v1573 = vunpack.c.l.b16 %v1396
          %v1574 = vunpack.c.h.b16 %v1396
          %v1575 = vunpack.c.l.b16 %v1397
          %v1576 = vunpack.c.h.b16 %v1397
          %v1577 = vunpack.c.l.b16 %v1398
          %v1578 = vunpack.c.h.b16 %v1398
          %v1579 = vunpack.c.l.b16 %v1399
          %v1580 = vunpack.c.h.b16 %v1399
          %v1581 = vunpack.c.l.b16 %v1400
          %v1582 = vunpack.c.h.b16 %v1400
          %v1583 = vunpack.c.l.b16 %v1401
          %v1584 = vunpack.c.h.b16 %v1401
          %v1585 = vunpack.c.l.b16 %v1402
          %v1586 = vunpack.c.h.b16 %v1402
          %v1587 = vunpack.c.l.b16 %v1403
          %v1588 = vunpack.c.h.b16 %v1403
          %v1589 = vunpack.c.l.b16 %v1404
          %v1590 = vunpack.c.h.b16 %v1404
          %v1591 = vpack.c.b16 %v1561, %v1559
          %v1592 = vpack.c.b16 %v1562, %v1560
          %v1593 = vpack.c.b16 %v1565, %v1563
          %v1594 = vpack.c.b16 %v1566, %v1564
          %v1595 = vpack.c.b16 %v1569, %v1567
          %v1596 = vpack.c.b16 %v1570, %v1568
          %v1597 = vpack.c.b16 %v1573, %v1571
          %v1598 = vpack.c.b16 %v1574, %v1572
          %v1599 = vpack.c.b16 %v1577, %v1575
          %v1600 = vpack.c.b16 %v1578, %v1576
          %v1601 = vpack.c.b16 %v1581, %v1579
          %v1602 = vpack.c.b16 %v1582, %v1580
          %v1603 = vpack.c.b16 %v1585, %v1583
          %v1604 = vpack.c.b16 %v1586, %v1584
          %v1605 = vpack.c.b16 %v1589, %v1587
          %v1606 = vpack.c.b16 %v1590, %v1588
          %1623 = vmatprep.subr.bf16.mxu0 %v1592
          %1624 = vmatpush1.bf16.msra.mxu0 %v1591
          %1625 = vmatprep.subr.bf16.mxu0 %v1594
          %1626 = vmatpush1.bf16.msra.mxu0 %v1593
          %1627 = vmatprep.subr.bf16.mxu0 %v1596
          %1628 = vmatpush1.bf16.msra.mxu0 %v1595
          %1629 = vmatprep.subr.bf16.mxu0 %v1598
          %1630 = vmatpush1.bf16.msra.mxu0 %v1597
          %1631 = vmatprep.subr.bf16.mxu0 %v1600
          %1632 = vmatpush1.bf16.msra.mxu0 %v1599
          %1633 = vmatprep.subr.bf16.mxu0 %v1602
          %1634 = vmatpush1.bf16.msra.mxu0 %v1601
          %1635 = vmatprep.subr.bf16.mxu0 %v1604
          %1636 = vmatpush1.bf16.msra.mxu0 %v1603
          %1637 = vmatprep.subr.bf16.mxu0 %v1606
          %1638 = vmatpush1.bf16.msra.mxu0 %v1605
          %1639 = vmatprep.subr.bf16.mxu0 0
          %1640 = vmatpush1.bf16.msra.mxu0 0
          %1641 = vmatprep.subr.bf16.mxu0 0
          %1642 = vmatpush1.bf16.msra.mxu0 0
          %1643 = vmatprep.subr.bf16.mxu0 0
          %1644 = vmatpush1.bf16.msra.mxu0 0
          %1645 = vmatprep.subr.bf16.mxu0 0
          %1646 = vmatpush1.bf16.msra.mxu0 0
          %1647 = vmatprep.subr.bf16.mxu0 0
          %1648 = vmatpush1.bf16.msra.mxu0 0
          %1649 = vmatprep.subr.bf16.mxu0 0
          %1650 = vmatpush1.bf16.msra.mxu0 0
          %1651 = vmatprep.subr.bf16.mxu0 0
          %1652 = vmatpush1.bf16.msra.mxu0 0
          %1653 = vmatprep.subr.bf16.mxu0 0
          %1654 = vmatpush1.bf16.msra.mxu0 0
          %1655 = vmatprep.mubr.bf16.mxu0 0
          %1656 = vmatmul.mubr.bf16.gmra.mrb[0].mxu0 %v1388
          %v1657 = vpop.f32.mrb[0].mxu0
          %v1658 = vadd.f32 %v1537, %v1657
          %v1659 = vpop.f32.mrb[0].mxu0
          %v1660 = vadd.f32 %v1539, %v1659
          %v1661 = vpop.f32.mrb[0].mxu0
          %v1662 = vpop.f32.mrb[0].mxu0
          %1663 = vdwg.mxu0
          %v1664 = vld [vmem:[%s9 + $0x4] sm:$0x3]
          %v1666 = vlaneseq
          %v1667 = vshrl.u32 %v1666, 7
          %v1668 = vsub.s32 0, %v1667
          %v1669 = vrot.slane %v1664, %v1668
          %v1670 = vlaneseq
          %v1671 = vshrl.u32 %v1670, 7
          %v1672 = vsub.s32 1, %v1671
          %v1673 = vrot.slane %v1664, %v1672
          %v1676 = vadd.f32 %v1658, %v1669
          %v1677 = vadd.f32 %v1660, %v1673
          %v1678 = vmax.f32 %v1676, 0.0
          %v1679 = vmax.f32 %v1677, 0.0
          %v1680 = vpack.c.bf16 %v1678, %v1678
          %v1681 = vpack.c.bf16 %v1679, %v1679
          %v1682 = vld [vmem:[%s8] sm:$0xf]
          %v1683 = vld [vmem:[%s8 + $0x4] sm:$0xf]
          %v1684 = vld [vmem:[%s8 + $0x8] sm:$0xf]
          %v1685 = vld [vmem:[%s8 + $0xc] sm:$0xf]
          %v1686 = vld [vmem:[%s8 + $0x10] sm:$0xf]
          %v1687 = vld [vmem:[%s8 + $0x14] sm:$0xf]
          %v1688 = vld [vmem:[%s8 + $0x18] sm:$0xf]
          %v1689 = vld [vmem:[%s8 + $0x1c] sm:$0xf]
          %v1690 = vld [vmem:[%s8 + $0x20] sm:$0xf]
          %v1691 = vld [vmem:[%s8 + $0x24] sm:$0xf]
          %v1692 = vld [vmem:[%s8 + $0x28] sm:$0xf]
          %v1693 = vld [vmem:[%s8 + $0x2c] sm:$0xf]
          %v1694 = vld [vmem:[%s8 + $0x30] sm:$0xf]
          %v1695 = vld [vmem:[%s8 + $0x34] sm:$0xf]
          %v1696 = vld [vmem:[%s8 + $0x38] sm:$0xf]
          %v1697 = vld [vmem:[%s8 + $0x3c] sm:$0xf]
          %v1698 = vld [vmem:[%s8 + $0x40] sm:$0xf]
          %v1699 = vld [vmem:[%s8 + $0x44] sm:$0xf]
          %v1700 = vld [vmem:[%s8 + $0x48] sm:$0xf]
          %v1701 = vld [vmem:[%s8 + $0x4c] sm:$0xf]
          %v1702 = vld [vmem:[%s8 + $0x50] sm:$0xf]
          %v1703 = vld [vmem:[%s8 + $0x54] sm:$0xf]
          %v1704 = vld [vmem:[%s8 + $0x58] sm:$0xf]
          %v1705 = vld [vmem:[%s8 + $0x5c] sm:$0xf]
          %v1706 = vld [vmem:[%s8 + $0x60] sm:$0xf]
          %v1707 = vld [vmem:[%s8 + $0x64] sm:$0xf]
          %v1708 = vld [vmem:[%s8 + $0x68] sm:$0xf]
          %v1709 = vld [vmem:[%s8 + $0x6c] sm:$0xf]
          %v1710 = vld [vmem:[%s8 + $0x70] sm:$0xf]
          %v1711 = vld [vmem:[%s8 + $0x74] sm:$0xf]
          %v1712 = vld [vmem:[%s8 + $0x78] sm:$0xf]
          %v1713 = vld [vmem:[%s8 + $0x7c] sm:$0xf]
          %v1714 = vld [vmem:[%s9 + $0x6] sm:$0x1]
          %v1716 = vlaneseq
          %v1717 = vshrl.u32 %v1716, 7
          %v1718 = vsub.s32 0, %v1717
          %v1719 = vrot.slane %v1714, %v1718
          %v1753 = vunpack.c.l.b16 %v1682
          %v1754 = vunpack.c.l.b16 %v1683
          %v1755 = vunpack.c.l.b16 %v1684
          %v1756 = vunpack.c.l.b16 %v1685
          %v1757 = vunpack.c.l.b16 %v1686
          %v1758 = vunpack.c.l.b16 %v1687
          %v1759 = vunpack.c.l.b16 %v1688
          %v1760 = vunpack.c.l.b16 %v1689
          %v1761 = vunpack.c.l.b16 %v1690
          %v1762 = vunpack.c.l.b16 %v1691
          %v1763 = vunpack.c.l.b16 %v1692
          %v1764 = vunpack.c.l.b16 %v1693
          %v1765 = vunpack.c.l.b16 %v1694
          %v1766 = vunpack.c.l.b16 %v1695
          %v1767 = vunpack.c.l.b16 %v1696
          %v1768 = vunpack.c.l.b16 %v1697
          %v1769 = vunpack.c.l.b16 %v1698
          %v1770 = vunpack.c.l.b16 %v1699
          %v1771 = vunpack.c.l.b16 %v1700
          %v1772 = vunpack.c.l.b16 %v1701
          %v1773 = vunpack.c.l.b16 %v1702
          %v1774 = vunpack.c.l.b16 %v1703
          %v1775 = vunpack.c.l.b16 %v1704
          %v1776 = vunpack.c.l.b16 %v1705
          %v1777 = vunpack.c.l.b16 %v1706
          %v1778 = vunpack.c.l.b16 %v1707
          %v1779 = vunpack.c.l.b16 %v1708
          %v1780 = vunpack.c.l.b16 %v1709
          %v1781 = vunpack.c.l.b16 %v1710
          %v1782 = vunpack.c.l.b16 %v1711
          %v1783 = vunpack.c.l.b16 %v1712
          %v1784 = vunpack.c.l.b16 %v1713
          %v1785 = vpack.c.b16 %v1754, %v1753
          %v1786 = vpack.c.b16 %v1756, %v1755
          %v1787 = vpack.c.b16 %v1758, %v1757
          %v1788 = vpack.c.b16 %v1760, %v1759
          %v1789 = vpack.c.b16 %v1762, %v1761
          %v1790 = vpack.c.b16 %v1764, %v1763
          %v1791 = vpack.c.b16 %v1766, %v1765
          %v1792 = vpack.c.b16 %v1768, %v1767
          %v1793 = vpack.c.b16 %v1770, %v1769
          %v1794 = vpack.c.b16 %v1772, %v1771
          %v1795 = vpack.c.b16 %v1774, %v1773
          %v1796 = vpack.c.b16 %v1776, %v1775
          %v1797 = vpack.c.b16 %v1778, %v1777
          %v1798 = vpack.c.b16 %v1780, %v1779
          %v1799 = vpack.c.b16 %v1782, %v1781
          %v1800 = vpack.c.b16 %v1784, %v1783
          %1817 = vmatprep.subr.bf16.mxu0 0
          %1818 = vmatpush1.bf16.msra.mxu0 %v1785
          %1819 = vmatprep.subr.bf16.mxu0 0
          %1820 = vmatpush1.bf16.msra.mxu0 %v1786
          %1821 = vmatprep.subr.bf16.mxu0 0
          %1822 = vmatpush1.bf16.msra.mxu0 %v1787
          %1823 = vmatprep.subr.bf16.mxu0 0
          %1824 = vmatpush1.bf16.msra.mxu0 %v1788
          %1825 = vmatprep.subr.bf16.mxu0 0
          %1826 = vmatpush1.bf16.msra.mxu0 %v1789
          %1827 = vmatprep.subr.bf16.mxu0 0
          %1828 = vmatpush1.bf16.msra.mxu0 %v1790
          %1829 = vmatprep.subr.bf16.mxu0 0
          %1830 = vmatpush1.bf16.msra.mxu0 %v1791
          %1831 = vmatprep.subr.bf16.mxu0 0
          %1832 = vmatpush1.bf16.msra.mxu0 %v1792
          %1833 = vmatprep.subr.bf16.mxu0 0
          %1834 = vmatpush1.bf16.msra.mxu0 %v1793
          %1835 = vmatprep.subr.bf16.mxu0 0
          %1836 = vmatpush1.bf16.msra.mxu0 %v1794
          %1837 = vmatprep.subr.bf16.mxu0 0
          %1838 = vmatpush1.bf16.msra.mxu0 %v1795
          %1839 = vmatprep.subr.bf16.mxu0 0
          %1840 = vmatpush1.bf16.msra.mxu0 %v1796
          %1841 = vmatprep.subr.bf16.mxu0 0
          %1842 = vmatpush1.bf16.msra.mxu0 %v1797
          %1843 = vmatprep.subr.bf16.mxu0 0
          %1844 = vmatpush1.bf16.msra.mxu0 %v1798
          %1845 = vmatprep.subr.bf16.mxu0 0
          %1846 = vmatpush1.bf16.msra.mxu0 %v1799
          %1847 = vmatprep.subr.bf16.mxu0 0
          %1848 = vmatpush1.bf16.msra.mxu0 %v1800
          %1849 = vmatprep.mubr.bf16.mxu0 %v1681
          %1850 = vmatmul.mubr.bf16.gmra.mrb[0].mxu0 %v1680
          %v1851 = vpop.f32.mrb[0].mxu0
          %v1852 = vadd.f32 %v1719, %v1851
          %v1853 = vpop.f32.mrb[0].mxu0
          %v1854 = vpop.f32.mrb[0].mxu0
          %v1855 = vpop.f32.mrb[0].mxu0
          %1856 = vdwg.mxu0
          %1857 = vst [vmem:[%s16] sm:$0xff] %v1852
        $region113: #{mmada_forward.1} parent=104 // pred_fallthru
          _
        %v1858 = vld [vmem:[#allocation2] sm:$0xff]
        %v1859 = vld [vmem:[%s572] sm:$0xf]
        %v1860 = vld [vmem:[%s572 + $0x4] sm:$0xf]
        %v1861 = vld [vmem:[%s572 + $0x8] sm:$0xf]
        %v1862 = vld [vmem:[%s572 + $0xc] sm:$0xf]
        %v1863 = vld [vmem:[%s572 + $0x10] sm:$0xf]
        %v1864 = vld [vmem:[%s572 + $0x14] sm:$0xf]
        %v1865 = vld [vmem:[%s572 + $0x18] sm:$0xf]
        %v1866 = vld [vmem:[%s572 + $0x1c] sm:$0xf]
        %v1867 = vld [vmem:[%s572 + $0x20] sm:$0xf]
        %v1868 = vld [vmem:[%s572 + $0x24] sm:$0xf]
        %v1869 = vld [vmem:[%s572 + $0x28] sm:$0xf]
        %v1870 = vld [vmem:[%s572 + $0x2c] sm:$0xf]
        %v1871 = vld [vmem:[%s572 + $0x30] sm:$0xf]
        %v1872 = vld [vmem:[%s572 + $0x34] sm:$0xf]
        %v1873 = vld [vmem:[%s572 + $0x38] sm:$0xf]
        %v1874 = vld [vmem:[%s572 + $0x3c] sm:$0xf]
        %v1875 = vld [vmem:[%s624] sm:$0x1]
        %v1877 = vlaneseq
        %v1878 = vshrl.u32 %v1877, 7
        %v1879 = vsub.s32 0, %v1878
        %v1880 = vrot.slane %v1875, %v1879
        %v1898 = vunpack.c.l.b16 %v1859
        %v1899 = vunpack.c.l.b16 %v1860
        %v1900 = vunpack.c.l.b16 %v1861
        %v1901 = vunpack.c.l.b16 %v1862
        %v1902 = vunpack.c.l.b16 %v1863
        %v1903 = vunpack.c.l.b16 %v1864
        %v1904 = vunpack.c.l.b16 %v1865
        %v1905 = vunpack.c.l.b16 %v1866
        %v1906 = vunpack.c.l.b16 %v1867
        %v1907 = vunpack.c.l.b16 %v1868
        %v1908 = vunpack.c.l.b16 %v1869
        %v1909 = vunpack.c.l.b16 %v1870
        %v1910 = vunpack.c.l.b16 %v1871
        %v1911 = vunpack.c.l.b16 %v1872
        %v1912 = vunpack.c.l.b16 %v1873
        %v1913 = vunpack.c.l.b16 %v1874
        %v1914 = vpack.c.b16 %v1899, %v1898
        %v1915 = vpack.c.b16 %v1901, %v1900
        %v1916 = vpack.c.b16 %v1903, %v1902
        %v1917 = vpack.c.b16 %v1905, %v1904
        %v1918 = vpack.c.b16 %v1907, %v1906
        %v1919 = vpack.c.b16 %v1909, %v1908
        %v1920 = vpack.c.b16 %v1911, %v1910
        %v1921 = vpack.c.b16 %v1913, %v1912
        %1930 = vmatprep.subr.bf16.mxu0 0
        %1931 = vmatpush1.bf16.msra.mxu0 %v1914
        %1932 = vmatprep.subr.bf16.mxu0 0
        %1933 = vmatpush1.bf16.msra.mxu0 %v1915
        %1934 = vmatprep.subr.bf16.mxu0 0
        %1935 = vmatpush1.bf16.msra.mxu0 %v1916
        %1936 = vmatprep.subr.bf16.mxu0 0
        %1937 = vmatpush1.bf16.msra.mxu0 %v1917
        %1938 = vmatprep.subr.bf16.mxu0 0
        %1939 = vmatpush1.bf16.msra.mxu0 %v1918
        %1940 = vmatprep.subr.bf16.mxu0 0
        %1941 = vmatpush1.bf16.msra.mxu0 %v1919
        %1942 = vmatprep.subr.bf16.mxu0 0
        %1943 = vmatpush1.bf16.msra.mxu0 %v1920
        %1944 = vmatprep.subr.bf16.mxu0 0
        %1945 = vmatpush1.bf16.msra.mxu0 %v1921
        %1946 = vmatprep.subr.bf16.mxu0 0
        %1947 = vmatpush1.bf16.msra.mxu0 0
        %1948 = vmatprep.subr.bf16.mxu0 0
        %1949 = vmatpush1.bf16.msra.mxu0 0
        %1950 = vmatprep.subr.bf16.mxu0 0
        %1951 = vmatpush1.bf16.msra.mxu0 0
        %1952 = vmatprep.subr.bf16.mxu0 0
        %1953 = vmatpush1.bf16.msra.mxu0 0
        %1954 = vmatprep.subr.bf16.mxu0 0
        %1955 = vmatpush1.bf16.msra.mxu0 0
        %1956 = vmatprep.subr.bf16.mxu0 0
        %1957 = vmatpush1.bf16.msra.mxu0 0
        %1958 = vmatprep.subr.bf16.mxu0 0
        %1959 = vmatpush1.bf16.msra.mxu0 0
        %1960 = vmatprep.subr.bf16.mxu0 0
        %1961 = vmatpush1.bf16.msra.mxu0 0
        %1962 = vmatprep.mubr.bf16.mxu0 0
        %1963 = vmatmul.mubr.bf16.gmra.mrb[0].mxu0 %v1858
        %v1964 = vpop.f32.mrb[0].mxu0
        %v1965 = vadd.f32 %v1880, %v1964
        %v1966 = vpop.f32.mrb[0].mxu0
        %v1967 = vpop.f32.mrb[0].mxu0
        %v1968 = vadd.f32 %v1880, %v1967
        %v1969 = vpop.f32.mrb[0].mxu0
        %1970 = vdwg.mxu0
        %v1971 = vpack.c.bf16 %v1968, %v1965
        %v1973 = vunpack.c.l.b16 %v1971
        %v1974 = vunpack.c.h.b16 %v1971
        %v1975 = vpack.c.b16 %v1973, %v1973
        %v1976 = vpack.c.b16 %v1974, %v1974
        %1979 = vst [vmem:[%s613] sm:$0xf] %v1975
        %1980 = vst [vmem:[%s613 + $0x4] sm:$0xf] %v1976
        %s1981 = sand.u32 %s302, 1
        %s1982 = scalar_lea.sflag [#allocation5], %s1981
        %s1983 = sand.u32 %s302, 1
        %s1984 = smul.addr %s1983, 8
        %s1985 = scalar_lea.vmem [#allocation4], %s1984
        // Predicated region
        $region114: #{mmada_forward.1} parent=104 // pred_check
          %p1986 = pneg %p312
        $region115: #{mmada_forward.1} parent=104 // pred_check_branch
          %1988 = sbr.rel (%p1986) target = $region117
        $region116: #{mmada_forward.1} parent=104 // pred_region
          %s1990 = ssub.s32 128, 128
          %1991 = vsyncadd %s1982, %s1990
          %s1992 = smul.addr %s32, 64
          %s1993 = scalar_lea.hbm %s12, %s1992
          %s1994 = sshll.u32 %s1985, 4
          %s1995 = int_to_ptr.vmem [resolvable:$true] %s1994
          %2000 = dma.vmem_to_hbm [thread:$0]  %s1995, 128, %s1993, %s1982, 64, 128, 4
        $region117: #{mmada_forward.1} parent=104 // pred_fallthru
          _
        // Predicated region
        $region118: #{mmada_forward.1} parent=104 // pred_check
          %p2001 = pneg %p333
        $region119: #{mmada_forward.1} parent=104 // pred_check_branch
          %2003 = sbr.rel (%p2001) target = $region121
        $region120: #{mmada_forward.1} parent=104 // pred_region
          _
        $region121: #{mmada_forward.1} parent=104 // pred_fallthru
          _
        // Predicated region
        $region122: #{mmada_forward.1} parent=104 // pred_check
          %p2004 = pneg %p354
        $region123: #{mmada_forward.1} parent=104 // pred_check_branch
          %2006 = sbr.rel (%p2004) target = $region125
        $region124: #{mmada_forward.1} parent=104 // pred_region
          _
        $region125: #{mmada_forward.1} parent=104 // pred_fallthru
          _
        // Predicated region
        $region126: #{mmada_forward.1} parent=104 // pred_check
          %p2007 = pneg %p375
        $region127: #{mmada_forward.1} parent=104 // pred_check_branch
          %2009 = sbr.rel (%p2007) target = $region129
        $region128: #{mmada_forward.1} parent=104 // pred_region
          %s2011 = ssub.s32 512, 512
          %2012 = vsyncadd [#allocation7], %s2011
          %s2013 = sshll.u32 [#allocation6], 4
          %s2014 = int_to_ptr.vmem [resolvable:$true] %s2013
          %2019 = dma.vmem_to_hbm [thread:$0]  %s2014, 512, %s15, [#allocation7], 128, 128, 8
        $region129: #{mmada_forward.1} parent=104 // pred_fallthru
          _
        // Predicated region
        $region130: #{mmada_forward.1} parent=104 // pred_check
          %p2020 = pneg %p396
        $region131: #{mmada_forward.1} parent=104 // pred_check_branch
          %2022 = sbr.rel (%p2020) target = $region133
        $region132: #{mmada_forward.1} parent=104 // pred_region
          _
        $region133: #{mmada_forward.1} parent=104 // pred_fallthru
          _
        // Predicated region
        $region134: #{mmada_forward.1} parent=104 // pred_check
          %p2023 = pneg %p333
        $region135: #{mmada_forward.1} parent=104 // pred_check_branch
          %2025 = sbr.rel (%p2023) target = $region137
        $region136: #{mmada_forward.1} parent=104 // pred_region
          _
        $region137: #{mmada_forward.1} parent=104 // pred_fallthru
          _
        // Predicated region
        $region138: #{mmada_forward.1} parent=104 // pred_check
          %p2026 = pneg %p354
        $region139: #{mmada_forward.1} parent=104 // pred_check_branch
          %2028 = sbr.rel (%p2026) target = $region141
        $region140: #{mmada_forward.1} parent=104 // pred_region
          _
        $region141: #{mmada_forward.1} parent=104 // pred_fallthru
          _
        // Predicated region
        $region142: #{mmada_forward.1} parent=104 // pred_check
          %p2029 = pneg %p375
        $region143: #{mmada_forward.1} parent=104 // pred_check_branch
          %2031 = sbr.rel (%p2029) target = $region145
        $region144: #{mmada_forward.1} parent=104 // pred_region
          %2032 = dma.done [#allocation7], 512
        $region145: #{mmada_forward.1} parent=104 // pred_fallthru
          _
        // Predicated region
        $region146: #{mmada_forward.1} parent=104 // pred_check
          %p2033 = pneg %p396
        $region147: #{mmada_forward.1} parent=104 // pred_check_branch
          %2035 = sbr.rel (%p2033) target = $region149
        $region148: #{mmada_forward.1} parent=104 // pred_region
          _
        $region149: #{mmada_forward.1} parent=104 // pred_fallthru
          _
      $region105: #{mmada_forward.1} parent=5 // pred_fallthru
        _
      %p2036 = scmp.le.s32.totalorder 2, %s27
      // Predicated region
      $region150: #{mmada_forward.1} parent=5 // pred_check
        %p2037 = pneg %p2036
      $region151: #{mmada_forward.1} parent=5 // pred_check_branch
        %2039 = sbr.rel (%p2037) target = $region153
      $region152: #{mmada_forward.1} parent=5 // pred_region
        %s2040 = ssub.s32 %s27, 2
        // Predicated region
        $region154: #{mmada_forward.1} parent=152 // pred_check
          %p2041 = pneg %p318
        $region155: #{mmada_forward.1} parent=152 // pred_check_branch
          %2043 = sbr.rel (%p2041) target = $region157
        $region156: #{mmada_forward.1} parent=152 // pred_region
          %s2044 = sand.u32 %s303, 1
          %s2045 = scalar_lea.sflag [#allocation5], %s2044
          %s2046 = sand.u32 %s303, 1
          %s2047 = smul.addr %s2046, 8
          %s2048 = scalar_lea.vmem [#allocation4], %s2047
          %2049 = dma.done %s2045, 128
        $region157: #{mmada_forward.1} parent=152 // pred_fallthru
          _
      $region153: #{mmada_forward.1} parent=5 // pred_fallthru
        _
    $region6: #{mmada_forward.1} parent=1 // loop_footer
      %s31 = sadd.s32 1, %s27
    $region7: #{mmada_forward.1} parent=1 // loop_footer_branch
      %26 = sbr.rel target = $region3
    $region8: #{mmada_forward.1} parent=1 // loop_exit
      _
    %2050 = vsyncpa [#allocation5], 1
    %s2051 = scalar_lea.sflag [#allocation5], 1
    %2052 = vsyncpa %s2051, 1
    %2053 = vsyncpa [#allocation7], 1

</llo_original>
